<compile_context>
chip_gen: v7x
topology: tpu7x:2x2x1
jax: 0.10.0
libtpu: 0.0.40
codegen_flags: <defaults>
</compile_context>

<pallas_src>
from math import exp

import numpy as np
import jax
import jax.numpy as jnp
from jax.experimental import pallas as pl
from jax.experimental.pallas import tpu as pltpu


# --------------------------------------------------------------------------
# Window construction (matches gaussian()/create_window() in the reference).
# --------------------------------------------------------------------------
def gaussian_1d(window_size, sigma):
    g = np.array(
        [exp(-(x - window_size // 2) ** 2 / float(2 * sigma ** 2))
         for x in range(window_size)],
        dtype=np.float32,
    )
    return g / g.sum()


def _band_matrices(H, W, window_size, sigma=1.5):
    """Square band matrices with the zero padding folded in, so that
    A @ x @ Bw == same-padded separable 2D Gaussian conv of the UNPADDED x."""
    g = gaussian_1d(window_size, sigma)
    pad = window_size // 2
    A = np.zeros((H, H + 2 * pad), dtype=np.float32)
    for r in range(H):
        A[r, r:r + window_size] = g
    A = A[:, pad:pad + H]                       # (H, H)  padding folded
    Bm = np.zeros((W + 2 * pad, W), dtype=np.float32)
    for c in range(W):
        Bm[c:c + window_size, c] = g
    Bm = Bm[pad:pad + W, :]                     # (W, W)  padding folded
    return jnp.asarray(A), jnp.asarray(Bm)


# --------------------------------------------------------------------------
# Per-generation VMEM sizing (query the chip; conservative fallback).
# --------------------------------------------------------------------------
def _vmem_config():
    """Returns (block_batch_budget_bytes, vmem_limit_bytes)."""
    cap = None
    try:
        info = pltpu.get_tpu_info()
        for name in ("vmem_capacity_bytes", "vmem_size_bytes", "vmem_bytes"):
            cap = getattr(info, name, None)
            if cap:
                break
    except Exception:
        cap = None
    if cap and cap >= (100 << 20):        # v5e / v6e: 128 MiB physical VMEM
        return 48 << 20, 96 << 20
    if cap:                               # v7x: 64 MiB per TensorCore
        return 28 << 20, 48 << 20
    return 16 << 20, 48 << 20             # unknown generation: conservative


def _pick_block_batch(B, H, W, budget_bytes):
    """Largest divisor of B whose per-step VMEM footprint fits the budget,
    capped at B//2 so the parallel grid keeps both v7x TensorCores busy."""
    # Per-plane f32 buffers: double-buffered inputs (2x2), three product
    # temporaries, five width-conv results, five height-conv results,
    # elementwise temporaries, plus the (Bt,H,H) broadcast of A.
    per_plane = 4 * (22 * H * W + H * H)
    fixed = 4 * (H * H + W * W)           # stationary A / Bw tiles
    bt_max = max(1, (budget_bytes - fixed) // per_plane)
    if B >= 2:
        bt_max = min(bt_max, B // 2)      # >= 2 grid steps (v7x dual-TC)
    bt = 1
    for d in range(1, B + 1):
        if B % d == 0 and d <= bt_max:
            bt = d
    return bt


# --------------------------------------------------------------------------
# Pallas kernel: Bt unpadded (H, W) planes per grid step, partial-sum output.
# --------------------------------------------------------------------------
def _ssim_kernel(a_ref, bw_ref, x1_ref, x2_ref, out_ref):
    Bt, H, W = x1_ref.shape

    x1 = x1_ref[...]                            # (Bt, H, W) f32
    x2 = x2_ref[...]
    bw = bw_ref[...]                            # (W, W) stationary

    def conv_w(p):
        # Width "same" conv: one 2-D MXU matmul per operand (M = Bt*H).
        y = jnp.dot(p.reshape(Bt * H, W), bw,
                    preferred_element_type=jnp.float32)
        return y.reshape(Bt, H, W)

    y_mu1 = conv_w(x1)
    y_mu2 = conv_w(x2)
    y_e11 = conv_w(x1 * x1)
    y_e22 = conv_w(x2 * x2)
    y_e12 = conv_w(x1 * x2)

    # Height conv: batched MXU matmul.  A is broadcast only to (Bt, H, H)
    # (not 5*Bt as before) and the single broadcast value is reused by all
    # five contractions.
    a_b = jnp.broadcast_to(a_ref[...][None, :, :], (Bt, H, H))

    def conv_h(y):
        return jnp.einsum("bhk,bkw->bhw", a_b, y,
                          preferred_element_type=jnp.float32)

    mu1 = conv_h(y_mu1)
    mu2 = conv_h(y_mu2)
    e11 = conv_h(y_e11)
    e22 = conv_h(y_e22)
    e12 = conv_h(y_e12)

    mu1_mu2 = mu1 * mu2
    mu_sq_sum = mu1 * mu1 + mu2 * mu2            # mu1^2 + mu2^2
    sigma_sum = (e11 + e22) - mu_sq_sum          # sigma1^2 + sigma2^2
    sigma12 = e12 - mu1_mu2

    C1 = 0.01 ** 2
    C2 = 0.03 ** 2
    num = (2.0 * mu1_mu2 + C1) * (2.0 * sigma12 + C2)
    den = (mu_sq_sum + C1) * (sigma_sum + C2)
    ssim_map = num * pl.reciprocal(den, approx=True)

    # Per-block partial sum, written as a lane-dense (1, 8, 128) tile.
    out_ref[...] = jnp.full((1, 8, 128), jnp.sum(ssim_map), dtype=jnp.float32)


def ssim_pallas(img1, img2, window_size=11, size_average=True):
    """SSIM forward matching the PyTorch SSIM module (size_average=True)."""
    assert size_average  # TODO(synk): per-sample mean path (size_average=False)
    N, C, H, W = img1.shape
    B = N * C

    A, Bw = _band_matrices(H, W, window_size)

    x1 = img1.astype(jnp.float32).reshape(B, H, W)
    x2 = img2.astype(jnp.float32).reshape(B, H, W)

    budget_bytes, vmem_limit = _vmem_config()
    Bt = _pick_block_batch(B, H, W, budget_bytes)
    steps = B // Bt

    matmul_flops = 2 * 5 * B * H * W * (H + W)
    cost = pl.CostEstimate(
        flops=matmul_flops + 15 * B * H * W,
        transcendentals=B * H * W,
        bytes_accessed=2 * B * H * W * 4 + (H * H + W * W) * 4
        + steps * 8 * 128 * 4,
    )

    partials = pl.pallas_call(
        _ssim_kernel,
        out_shape=jax.ShapeDtypeStruct((steps, 8, 128), jnp.float32),
        grid_spec=pltpu.PrefetchScalarGridSpec(
            num_scalar_prefetch=0,
            grid=(steps,),
            in_specs=[
                pl.BlockSpec((H, H), lambda b: (0, 0)),          # A (fetched once)
                pl.BlockSpec((W, W), lambda b: (0, 0)),          # Bw (fetched once)
                pl.BlockSpec((Bt, H, W), lambda b: (b, 0, 0)),   # img1 planes
                pl.BlockSpec((Bt, H, W), lambda b: (b, 0, 0)),   # img2 planes
            ],
            out_specs=pl.BlockSpec((1, 8, 128), lambda b: (b, 0, 0)),
        ),
        compiler_params=pltpu.CompilerParams(
            dimension_semantics=("parallel",),
            vmem_limit_bytes=vmem_limit,
        ),
        cost_estimate=cost,
    )(A, Bw, x1, x2)

    total = jnp.sum(partials[:, 0, 0])          # ssim_map sum over N*C*H*W
    return (total / (B * H * W)).astype(img1.dtype)


# --------------------------------------------------------------------------
# Pure-JAX reference (mirrors the PyTorch _ssim) for a sanity check.
# --------------------------------------------------------------------------
def ssim_reference(img1, img2, window_size=11):
    N, C, H, W = img1.shape
    g = jnp.asarray(gaussian_1d(window_size, 1.5))
    w2d = jnp.outer(g, g)
    window = jnp.broadcast_to(w2d[None, None], (C, 1, window_size, window_size))
    pad = window_size // 2

    def conv(x):
        return jax.lax.conv_general_dilated(
            x, window, window_strides=(1, 1),
            padding=[(pad, pad), (pad, pad)],
            feature_group_count=C,
            dimension_numbers=("NCHW", "OIHW", "NCHW"))

    mu1 = conv(img1)
    mu2 = conv(img2)
    mu1_sq, mu2_sq, mu1_mu2 = mu1 * mu1, mu2 * mu2, mu1 * mu2
    sigma1_sq = conv(img1 * img1) - mu1_sq
    sigma2_sq = conv(img2 * img2) - mu2_sq
    sigma12 = conv(img1 * img2) - mu1_mu2
    C1, C2 = 0.01 ** 2, 0.03 ** 2
    ssim_map = ((2 * mu1_mu2 + C1) * (2 * sigma12 + C2)) / (
        (mu1_sq + mu2_sq + C1) * (sigma1_sq + sigma2_sq + C2))
    return ssim_map.mean()


if __name__ == "__main__":
    key = jax.random.PRNGKey(0)
    k1, k2 = jax.random.split(key)
    img1 = jax.random.uniform(k1, (2, 4, 16, 16), dtype=jnp.float32)
    img2 = jax.random.uniform(k2, (2, 4, 16, 16), dtype=jnp.float32)

    out = ssim_pallas(img1, img2)
    jax.block_until_ready(out)

    ref = ssim_reference(img1, img2)
    jax.block_until_ready(ref)

    assert jnp.allclose(out, ref, rtol=5e-3, atol=5e-3), (out, ref)
    print("KERNEL_OK")
</pallas_src>

<mosaic_0001>
module attributes {stable_mosaic.version = 11 : i64} {
  func.func @_ssim_kernel(%arg0: i32, %arg1: memref<16x16xf32, #tpu.memory_space<vmem>>, %arg2: memref<16x16xf32, #tpu.memory_space<vmem>>, %arg3: memref<4x16x16xf32, #tpu.memory_space<vmem>>, %arg4: memref<4x16x16xf32, #tpu.memory_space<vmem>>, %arg5: memref<1x8x128xf32, #tpu.memory_space<vmem>>) attributes {dimension_semantics = [#tpu.dimension_semantics<parallel>], iteration_bounds = array<i64: 2>, scalar_prefetch = 0 : i64, scratch_operands = 0 : i64, tpu.core_type = #tpu.core_type<tc>, window_params = [{pipeline_mode = #tpu.pipeline_mode<synchronous>, transform_indices = @transform_0, window_bounds = array<i64: 16, 16>}, {pipeline_mode = #tpu.pipeline_mode<synchronous>, transform_indices = @transform_1, window_bounds = array<i64: 16, 16>}, {transform_indices = @transform_2, window_bounds = array<i64: 4, 16, 16>}, {transform_indices = @transform_3, window_bounds = array<i64: 4, 16, 16>}, {transform_indices = @transform_4, window_bounds = array<i64: 1, 8, 128>}]} {
    %c0 = arith.constant 0 : index
    %c0_0 = arith.constant 0 : index
    %c0_1 = arith.constant 0 : index
    %0 = vector.load %arg3[%c0, %c0_0, %c0_1] : memref<4x16x16xf32, #tpu.memory_space<vmem>>, vector<4x16x16xf32>
    %c0_2 = arith.constant 0 : index
    %c0_3 = arith.constant 0 : index
    %c0_4 = arith.constant 0 : index
    %1 = vector.load %arg4[%c0_2, %c0_3, %c0_4] : memref<4x16x16xf32, #tpu.memory_space<vmem>>, vector<4x16x16xf32>
    %c0_5 = arith.constant 0 : index
    %c0_6 = arith.constant 0 : index
    %2 = vector.load %arg2[%c0_5, %c0_6] : memref<16x16xf32, #tpu.memory_space<vmem>>, vector<16x16xf32>
    %3 = vector.shape_cast %0 : vector<4x16x16xf32> to vector<64x16xf32>
    %cst = arith.constant dense<0.000000e+00> : vector<64x16xf32>
    %4 = tpu.matmul %3, %2, %cst {dimension_numbers = #tpu.dot_dimension_numbers<[1], [0], [0], [1], [0, 0, 1, 1], [], []>} : vector<64x16xf32>, vector<16x16xf32>, vector<64x16xf32> -> vector<64x16xf32>
    %5 = vector.shape_cast %4 : vector<64x16xf32> to vector<4x16x16xf32>
    %6 = vector.shape_cast %1 : vector<4x16x16xf32> to vector<64x16xf32>
    %cst_7 = arith.constant dense<0.000000e+00> : vector<64x16xf32>
    %7 = tpu.matmul %6, %2, %cst_7 {dimension_numbers = #tpu.dot_dimension_numbers<[1], [0], [0], [1], [0, 0, 1, 1], [], []>} : vector<64x16xf32>, vector<16x16xf32>, vector<64x16xf32> -> vector<64x16xf32>
    %8 = vector.shape_cast %7 : vector<64x16xf32> to vector<4x16x16xf32>
    %9 = arith.mulf %0, %0 : vector<4x16x16xf32>
    %10 = vector.shape_cast %9 : vector<4x16x16xf32> to vector<64x16xf32>
    %cst_8 = arith.constant dense<0.000000e+00> : vector<64x16xf32>
    %11 = tpu.matmul %10, %2, %cst_8 {dimension_numbers = #tpu.dot_dimension_numbers<[1], [0], [0], [1], [0, 0, 1, 1], [], []>} : vector<64x16xf32>, vector<16x16xf32>, vector<64x16xf32> -> vector<64x16xf32>
    %12 = vector.shape_cast %11 : vector<64x16xf32> to vector<4x16x16xf32>
    %13 = arith.mulf %1, %1 : vector<4x16x16xf32>
    %14 = vector.shape_cast %13 : vector<4x16x16xf32> to vector<64x16xf32>
    %cst_9 = arith.constant dense<0.000000e+00> : vector<64x16xf32>
    %15 = tpu.matmul %14, %2, %cst_9 {dimension_numbers = #tpu.dot_dimension_numbers<[1], [0], [0], [1], [0, 0, 1, 1], [], []>} : vector<64x16xf32>, vector<16x16xf32>, vector<64x16xf32> -> vector<64x16xf32>
    %16 = vector.shape_cast %15 : vector<64x16xf32> to vector<4x16x16xf32>
    %17 = arith.mulf %0, %1 : vector<4x16x16xf32>
    %18 = vector.shape_cast %17 : vector<4x16x16xf32> to vector<64x16xf32>
    %cst_10 = arith.constant dense<0.000000e+00> : vector<64x16xf32>
    %19 = tpu.matmul %18, %2, %cst_10 {dimension_numbers = #tpu.dot_dimension_numbers<[1], [0], [0], [1], [0, 0, 1, 1], [], []>} : vector<64x16xf32>, vector<16x16xf32>, vector<64x16xf32> -> vector<64x16xf32>
    %20 = vector.shape_cast %19 : vector<64x16xf32> to vector<4x16x16xf32>
    %c0_11 = arith.constant 0 : index
    %c0_12 = arith.constant 0 : index
    %21 = vector.load %arg1[%c0_11, %c0_12] : memref<16x16xf32, #tpu.memory_space<vmem>>, vector<16x16xf32>
    %22 = vector.shape_cast %21 : vector<16x16xf32> to vector<1x16x16xf32>
    %23 = vector.shape_cast %22 : vector<1x16x16xf32> to vector<1x16x16xf32>
    %24 = vector.broadcast %23 : vector<1x16x16xf32> to vector<4x16x16xf32>
    "tpu.trace_start"() <{level = 10 : i32, message = "bhk,bkw->bhw"}> : () -> ()
    %cst_13 = arith.constant dense<0.000000e+00> : vector<4x16x16xf32>
    %25 = tpu.matmul %24, %5, %cst_13 {dimension_numbers = #tpu.dot_dimension_numbers<[2], [1], [1], [2], [0, 0, 0, 1, 1, 2], [0], [0]>} : vector<4x16x16xf32>, vector<4x16x16xf32>, vector<4x16x16xf32> -> vector<4x16x16xf32>
    %cst_14 = arith.constant dense<0.000000e+00> : vector<4x16x16xf32>
    %26 = tpu.matmul %24, %8, %cst_14 {dimension_numbers = #tpu.dot_dimension_numbers<[2], [1], [1], [2], [0, 0, 0, 1, 1, 2], [0], [0]>} : vector<4x16x16xf32>, vector<4x16x16xf32>, vector<4x16x16xf32> -> vector<4x16x16xf32>
    %cst_15 = arith.constant dense<0.000000e+00> : vector<4x16x16xf32>
    %27 = tpu.matmul %24, %12, %cst_15 {dimension_numbers = #tpu.dot_dimension_numbers<[2], [1], [1], [2], [0, 0, 0, 1, 1, 2], [0], [0]>} : vector<4x16x16xf32>, vector<4x16x16xf32>, vector<4x16x16xf32> -> vector<4x16x16xf32>
    %cst_16 = arith.constant dense<0.000000e+00> : vector<4x16x16xf32>
    %28 = tpu.matmul %24, %16, %cst_16 {dimension_numbers = #tpu.dot_dimension_numbers<[2], [1], [1], [2], [0, 0, 0, 1, 1, 2], [0], [0]>} : vector<4x16x16xf32>, vector<4x16x16xf32>, vector<4x16x16xf32> -> vector<4x16x16xf32>
    %cst_17 = arith.constant dense<0.000000e+00> : vector<4x16x16xf32>
    %29 = tpu.matmul %24, %20, %cst_17 {dimension_numbers = #tpu.dot_dimension_numbers<[2], [1], [1], [2], [0, 0, 0, 1, 1, 2], [0], [0]>} : vector<4x16x16xf32>, vector<4x16x16xf32>, vector<4x16x16xf32> -> vector<4x16x16xf32>
    "tpu.trace_stop"() : () -> ()
    %30 = arith.mulf %25, %26 : vector<4x16x16xf32>
    %31 = arith.mulf %25, %25 : vector<4x16x16xf32>
    %32 = arith.mulf %26, %26 : vector<4x16x16xf32>
    %33 = arith.addf %31, %32 : vector<4x16x16xf32>
    %34 = arith.addf %27, %28 : vector<4x16x16xf32>
    %35 = arith.subf %34, %33 : vector<4x16x16xf32>
    %36 = arith.subf %29, %30 : vector<4x16x16xf32>
    %cst_18 = arith.constant 2.000000e+00 : f32
    %37 = vector.broadcast %cst_18 : f32 to vector<4x16x16xf32>
    %38 = arith.mulf %37, %30 : vector<4x16x16xf32>
    %cst_19 = arith.constant 9.99999974E-5 : f32
    %39 = vector.broadcast %cst_19 : f32 to vector<4x16x16xf32>
    %40 = arith.addf %38, %39 : vector<4x16x16xf32>
    %cst_20 = arith.constant 2.000000e+00 : f32
    %41 = vector.broadcast %cst_20 : f32 to vector<4x16x16xf32>
    %42 = arith.mulf %41, %36 : vector<4x16x16xf32>
    %cst_21 = arith.constant 8.99999984E-4 : f32
    %43 = vector.broadcast %cst_21 : f32 to vector<4x16x16xf32>
    %44 = arith.addf %42, %43 : vector<4x16x16xf32>
    %45 = arith.mulf %40, %44 : vector<4x16x16xf32>
    %cst_22 = arith.constant 9.99999974E-5 : f32
    %46 = vector.broadcast %cst_22 : f32 to vector<4x16x16xf32>
    %47 = arith.addf %33, %46 : vector<4x16x16xf32>
    %cst_23 = arith.constant 8.99999984E-4 : f32
    %48 = vector.broadcast %cst_23 : f32 to vector<4x16x16xf32>
    %49 = arith.addf %35, %48 : vector<4x16x16xf32>
    %50 = arith.mulf %47, %49 : vector<4x16x16xf32>
    %51 = tpu.reciprocal %50 {approx = true} : vector<4x16x16xf32> -> vector<4x16x16xf32>
    %52 = arith.mulf %45, %51 : vector<4x16x16xf32>
    %53 = vector.shape_cast %52 : vector<4x16x16xf32> to vector<1x4x16x16xf32>
    %cst_24 = arith.constant dense<0.000000e+00> : vector<1xf32>
    %54 = vector.multi_reduction <add>, %53, %cst_24 [1, 2, 3] : vector<1x4x16x16xf32> to vector<1xf32>
    %55 = vector.shape_cast %54 : vector<1xf32> to vector<1x1x1x1xf32>
    %56 = vector.extract %55[0, 0, 0, 0] : f32 from vector<1x1x1x1xf32>
    %57 = vector.broadcast %56 : f32 to vector<1x8x128xf32>
    %c0_25 = arith.constant 0 : index
    %c0_26 = arith.constant 0 : index
    %c0_27 = arith.constant 0 : index
    %58 = vector.load %arg5[%c0_25, %c0_26, %c0_27] : memref<1x8x128xf32, #tpu.memory_space<vmem>>, vector<1x8x128xf32>
    tpu.vector_store %arg5[%c0_25, %c0_26, %c0_27], %57 {strides = array<i32>} : memref<1x8x128xf32, #tpu.memory_space<vmem>>, vector<1x8x128xf32>,
    return
  }
  func.func @transform_0(%arg0: i32) -> (i32, i32) {
    %c0_i32 = arith.constant 0 : i32
    %c0_i32_0 = arith.constant 0 : i32
    %c0_i32_1 = arith.constant 0 : i32
    return %c0_i32, %c0_i32_0 : i32, i32
  }
  func.func @transform_1(%arg0: i32) -> (i32, i32) {
    %c0_i32 = arith.constant 0 : i32
    %c0_i32_0 = arith.constant 0 : i32
    %c0_i32_1 = arith.constant 0 : i32
    return %c0_i32, %c0_i32_0 : i32, i32
  }
  func.func @transform_2(%arg0: i32) -> (i32, i32, i32) {
    %c0_i32 = arith.constant 0 : i32
    %c0_i32_0 = arith.constant 0 : i32
    %c0_i32_1 = arith.constant 0 : i32
    return %arg0, %c0_i32, %c0_i32_0 : i32, i32, i32
  }
  func.func @transform_3(%arg0: i32) -> (i32, i32, i32) {
    %c0_i32 = arith.constant 0 : i32
    %c0_i32_0 = arith.constant 0 : i32
    %c0_i32_1 = arith.constant 0 : i32
    return %arg0, %c0_i32, %c0_i32_0 : i32, i32, i32
  }
  func.func @transform_4(%arg0: i32) -> (i32, i32, i32) {
    %c0_i32 = arith.constant 0 : i32
    %c0_i32_0 = arith.constant 0 : i32
    %c0_i32_1 = arith.constant 0 : i32
    return %arg0, %c0_i32, %c0_i32_0 : i32, i32, i32
  }
}

</mosaic_0001>

<llo_original>
// kernel: tpu_custom_call.1
$region0: #{tpu_custom_call.1}
  #allocation0 [shape = 'u32[]', space=smem, size = 0x4, offset = 0x4, fixed_abs, tag = 'smem constant byte address 0x4 - core index']
  #allocation1 [shape = 'u32[144,128]{1,0:T(1,128)}', space=vmem, size = 0x12000, scoped, tag = 'internal scratch']
  %s0 = inlined_call_operand.hbm [shape: f32[16,16], index: 0, kind: input, shape index: {}]
  %s1 = inlined_call_operand.hbm [shape: f32[16,16], index: 1, kind: input, shape index: {}]
  %s2 = inlined_call_operand.hbm [shape: f32[8,16,16], index: 2, kind: input, shape index: {}]
  %s3 = inlined_call_operand.hbm [shape: f32[8,16,16], index: 3, kind: input, shape index: {}]
  %s4 = inlined_call_operand.hbm [shape: f32[2,8,128], index: 4, kind: output, shape index: {}]
  %s5 = sld [smem:[#allocation0]]
  $region65: #{tpu_custom_call.1} parent=0
    _
  %s7 = ssub.s32 1, %s5
  %s8 = scalar_select 0, %s7, %s5
  $region1: #{tpu_custom_call.1} parent=0
    #allocation2 [shape = 'u8[8192]{0}', space=vmem, size = 0x2000, scoped, tag = 'input window, operand 0, single buffered']
    #allocation3 [shape = 's32[2]{0}', space=sflag, size = 0x8, scoped, tag = 'scoped memory for tpu_custom_call.1']
    #allocation4 [shape = 's32[2]{0}', space=sflag, size = 0x8, scoped, tag = 'scoped memory for tpu_custom_call.1']
    #allocation5 [shape = 'u8[8192]{0}', space=vmem, size = 0x2000, scoped, tag = 'input window, operand 1, single buffered']
    #allocation6 [shape = 's32[1]{0}', space=sflag, size = 0x4, scoped, tag = 'scoped memory for tpu_custom_call.1']
    #allocation7 [shape = 'u8[65536]{0}', space=vmem, size = 0x10000, scoped, tag = 'input window, operand 2']
    #allocation8 [shape = 'u8[65536]{0}', space=vmem, size = 0x10000, scoped, tag = 'input window, operand 3']
    #allocation9 [shape = 'u8[8192]{0}', space=vmem, size = 0x2000, scoped, tag = 'output window, operand 0']
    %9 = vsyncpa [#allocation3], 0
    %10 = vsyncpa [#allocation6], 0
    %11 = vsyncpa [#allocation4], 0
    %s12 = scalar_lea.sflag [#allocation4], 1
    %13 = vsyncpa %s12, 0
    loop: start=0, step=1, limit=4
    $region2: #{tpu_custom_call.1} parent=1 // loop_pre_header
      _
    $region3: #{tpu_custom_call.1} parent=1 // loop_header
      %s15 = sphi 0, %s19
      %p16 = scmp.ge.s32.totalorder %s15, 4
      %s23 = sphi 0, %s23
      %s25 = sphi 0, %s23
      %s26 = sphi 0, %s25
      %s40 = sphi 0, %s26
      %s44 = sphi 0, %s44
      %s46 = sphi 0, %s44
      %s47 = sphi 0, %s46
      %s61 = sphi 0, %s47
      %s67 = sphi 0, %s69
      %s70 = sphi 0, %s67
      %s71 = sphi 0, %s70
      %s87 = sphi 0, %s71
      %s93 = sphi 0, %s95
      %s96 = sphi 0, %s93
      %s97 = sphi 0, %s96
      %s113 = sphi 0, %s97
      %s119 = sphi 0, %s121
      %s122 = sphi 0, %s119
      %s123 = sphi 0, %s122
      %s139 = sphi 0, %s123
    $region4: #{tpu_custom_call.1} parent=1 // loop_header_branch
      %18 = sbr.rel (%p16) target = $region8
    $region5: #{tpu_custom_call.1} parent=1 // loop_body
      %s20 = ssub.s32 %s15, 1
      %s21 = ssub.s32 %s15, 2
      %s22 = sadd.s32 %s15, 1
      %s24 = sadd.s32 %s23, 1
      %p27 = scmp.eq.s32.totalorder %s15, 1
      %p28 = scmp.ne.s32.totalorder %s23, %s25
      %p29 = scmp.eq.s32.totalorder %s15, 0
      %p30 = por %p28, %p29
      %p31 = scmp.ne.s32.totalorder %s23, %s25
      %p32 = scmp.eq.s32.totalorder %s20, 1
      %p33 = por %p31, %p32
      %p34 = scmp.ne.s32.totalorder %s25, %s26
      %p35 = scmp.eq.s32.totalorder %s20, 0
      %p36 = por %p34, %p35
      %p37 = scmp.ne.s32.totalorder %s25, %s26
      %p38 = scmp.eq.s32.totalorder %s21, 1
      %p39 = por %p37, %p38
      %p41 = scmp.ne.s32.totalorder %s26, %s40
      %p42 = scmp.eq.s32.totalorder %s21, 0
      %p43 = por %p41, %p42
      %s45 = sadd.s32 %s44, 1
      %p48 = scmp.eq.s32.totalorder %s15, 1
      %p49 = scmp.ne.s32.totalorder %s44, %s46
      %p50 = scmp.eq.s32.totalorder %s15, 0
      %p51 = por %p49, %p50
      %p52 = scmp.ne.s32.totalorder %s44, %s46
      %p53 = scmp.eq.s32.totalorder %s20, 1
      %p54 = por %p52, %p53
      %p55 = scmp.ne.s32.totalorder %s46, %s47
      %p56 = scmp.eq.s32.totalorder %s20, 0
      %p57 = por %p55, %p56
      %p58 = scmp.ne.s32.totalorder %s46, %s47
      %p59 = scmp.eq.s32.totalorder %s21, 1
      %p60 = por %p58, %p59
      %p62 = scmp.ne.s32.totalorder %s47, %s61
      %p63 = scmp.eq.s32.totalorder %s21, 0
      %p64 = por %p62, %p63
      %s65 = ssub.s32 %s15, %s22
      %p66 = scmp.eq.s32.totalorder %s65, 0
      %s68 = sadd.s32 %s67, 1
      %s69 = scalar_select %p66, %s67, %s68
      %p72 = pneg %p66
      %p73 = scmp.eq.s32.totalorder %s15, 1
      %p74 = por %p72, %p73
      %p75 = scmp.ne.s32.totalorder %s67, %s70
      %p76 = scmp.eq.s32.totalorder %s15, 0
      %p77 = por %p75, %p76
      %p78 = scmp.ne.s32.totalorder %s67, %s70
      %p79 = scmp.eq.s32.totalorder %s20, 1
      %p80 = por %p78, %p79
      %p81 = scmp.ne.s32.totalorder %s70, %s71
      %p82 = scmp.eq.s32.totalorder %s20, 0
      %p83 = por %p81, %p82
      %p84 = scmp.ne.s32.totalorder %s70, %s71
      %p85 = scmp.eq.s32.totalorder %s21, 1
      %p86 = por %p84, %p85
      %p88 = scmp.ne.s32.totalorder %s71, %s87
      %p89 = scmp.eq.s32.totalorder %s21, 0
      %p90 = por %p88, %p89
      %s91 = ssub.s32 %s15, %s22
      %p92 = scmp.eq.s32.totalorder %s91, 0
      %s94 = sadd.s32 %s93, 1
      %s95 = scalar_select %p92, %s93, %s94
      %p98 = pneg %p92
      %p99 = scmp.eq.s32.totalorder %s15, 1
      %p100 = por %p98, %p99
      %p101 = scmp.ne.s32.totalorder %s93, %s96
      %p102 = scmp.eq.s32.totalorder %s15, 0
      %p103 = por %p101, %p102
      %p104 = scmp.ne.s32.totalorder %s93, %s96
      %p105 = scmp.eq.s32.totalorder %s20, 1
      %p106 = por %p104, %p105
      %p107 = scmp.ne.s32.totalorder %s96, %s97
      %p108 = scmp.eq.s32.totalorder %s20, 0
      %p109 = por %p107, %p108
      %p110 = scmp.ne.s32.totalorder %s96, %s97
      %p111 = scmp.eq.s32.totalorder %s21, 1
      %p112 = por %p110, %p111
      %p114 = scmp.ne.s32.totalorder %s97, %s113
      %p115 = scmp.eq.s32.totalorder %s21, 0
      %p116 = por %p114, %p115
      %s117 = ssub.s32 %s15, %s22
      %p118 = scmp.eq.s32.totalorder %s117, 0
      %s120 = sadd.s32 %s119, 1
      %s121 = scalar_select %p118, %s119, %s120
      %p124 = pneg %p118
      %p125 = scmp.eq.s32.totalorder %s15, 1
      %p126 = por %p124, %p125
      %p127 = scmp.ne.s32.totalorder %s119, %s122
      %p128 = scmp.eq.s32.totalorder %s15, 0
      %p129 = por %p127, %p128
      %p130 = scmp.ne.s32.totalorder %s119, %s122
      %p131 = scmp.eq.s32.totalorder %s20, 1
      %p132 = por %p130, %p131
      %p133 = scmp.ne.s32.totalorder %s122, %s123
      %p134 = scmp.eq.s32.totalorder %s20, 0
      %p135 = por %p133, %p134
      %p136 = scmp.ne.s32.totalorder %s122, %s123
      %p137 = scmp.eq.s32.totalorder %s21, 1
      %p138 = por %p136, %p137
      %p140 = scmp.ne.s32.totalorder %s123, %s139
      %p141 = scmp.eq.s32.totalorder %s21, 0
      %p142 = por %p140, %p141
      %p143 = scmp.le.s32.totalorder 1, %s15
      %p144 = scmp.lt.s32.totalorder %s15, 3
      %p145 = pnand %p143, %p144
      %p146 = pneg %p145
      // Predicated region
      $region9: #{tpu_custom_call.1} parent=5 // pred_check
        _
      $region10: #{tpu_custom_call.1} parent=5 // pred_check_branch
        %148 = sbr.rel (%p145) target = $region12
      $region11: #{tpu_custom_call.1} parent=5 // pred_region
        %s149 = ssub.s32 %s15, 1
        // Predicated region
        $region13: #{tpu_custom_call.1} parent=11 // pred_check
          %p150 = pneg %p36
        $region14: #{tpu_custom_call.1} parent=11 // pred_check_branch
          %152 = sbr.rel (%p150) target = $region16
        $region15: #{tpu_custom_call.1} parent=11 // pred_region
          %s154 = ssub.s32 256, 256
          %155 = vsyncadd [#allocation3], %s154
          %s156 = sshll.u32 [#allocation2], 4
          %s157 = int_to_ptr.vmem [resolvable:$true] %s156
          %162 = dma.hbm_to_vmem [thread:$0]  %s0, 256, %s157, [#allocation3], 128, 128, 8
        $region16: #{tpu_custom_call.1} parent=11 // pred_fallthru
          _
        // Predicated region
        $region17: #{tpu_custom_call.1} parent=11 // pred_check
          %p163 = pneg %p57
        $region18: #{tpu_custom_call.1} parent=11 // pred_check_branch
          %165 = sbr.rel (%p163) target = $region20
        $region19: #{tpu_custom_call.1} parent=11 // pred_region
          %s167 = ssub.s32 256, 256
          %168 = vsyncadd [#allocation6], %s167
          %s169 = sshll.u32 [#allocation5], 4
          %s170 = int_to_ptr.vmem [resolvable:$true] %s169
          %175 = dma.hbm_to_vmem [thread:$0]  %s1, 256, %s170, [#allocation6], 128, 128, 8
        $region20: #{tpu_custom_call.1} parent=11 // pred_fallthru
          _
      $region12: #{tpu_custom_call.1} parent=5 // pred_fallthru
        _
      %p176 = scmp.lt.s32.totalorder %s15, 2
      // Predicated region
      $region21: #{tpu_custom_call.1} parent=5 // pred_check
        %p177 = pneg %p176
      $region22: #{tpu_custom_call.1} parent=5 // pred_check_branch
        %179 = sbr.rel (%p177) target = $region24
      $region23: #{tpu_custom_call.1} parent=5 // pred_region
        // Predicated region
        $region25: #{tpu_custom_call.1} parent=23 // pred_check
          %p180 = pneg %p77
        $region26: #{tpu_custom_call.1} parent=23 // pred_check_branch
          %182 = sbr.rel (%p180) target = $region28
        $region27: #{tpu_custom_call.1} parent=23 // pred_region
          %s183 = sand.u32 %s15, 1
          %s184 = scalar_lea.sflag [#allocation3], %s183
          %s185 = sand.u32 %s67, 1
          %s186 = smul.addr %s185, 64
          %s187 = scalar_lea.vmem [#allocation7], %s186
          %s188 = smul.u32 4, %s15
          %s190 = ssub.s32 1024, 1024
          %191 = vsyncadd %s184, %s190
          %s192 = smul.addr %s188, 2
          %s193 = smul.addr %s192, 128
          %s194 = scalar_lea.hbm %s2, %s193
          %s195 = sshll.u32 %s187, 4
          %s196 = int_to_ptr.vmem [resolvable:$true] %s195
          %201 = dma.hbm_to_vmem [thread:$0]  %s194, 1024, %s196, %s184, 128, 128, 8
        $region28: #{tpu_custom_call.1} parent=23 // pred_fallthru
          _
        // Predicated region
        $region29: #{tpu_custom_call.1} parent=23 // pred_check
          %p202 = pneg %p103
        $region30: #{tpu_custom_call.1} parent=23 // pred_check_branch
          %204 = sbr.rel (%p202) target = $region32
        $region31: #{tpu_custom_call.1} parent=23 // pred_region
          %s205 = sand.u32 %s15, 1
          %s206 = scalar_lea.sflag [#allocation3], %s205
          %s207 = sand.u32 %s93, 1
          %s208 = smul.addr %s207, 64
          %s209 = scalar_lea.vmem [#allocation8], %s208
          %s210 = smul.u32 4, %s15
          %s212 = ssub.s32 1024, 1024
          %213 = vsyncadd %s206, %s212
          %s214 = smul.addr %s210, 2
          %s215 = smul.addr %s214, 128
          %s216 = scalar_lea.hbm %s3, %s215
          %s217 = sshll.u32 %s209, 4
          %s218 = int_to_ptr.vmem [resolvable:$true] %s217
          %223 = dma.hbm_to_vmem [thread:$0]  %s216, 1024, %s218, %s206, 128, 128, 8
        $region32: #{tpu_custom_call.1} parent=23 // pred_fallthru
          _
      $region24: #{tpu_custom_call.1} parent=5 // pred_fallthru
        _
      %p224 = scmp.le.s32.totalorder 1, %s15
      %p225 = scmp.lt.s32.totalorder %s15, 3
      %p226 = pnand %p224, %p225
      %p227 = pneg %p226
      // Predicated region
      $region33: #{tpu_custom_call.1} parent=5 // pred_check
        _
      $region34: #{tpu_custom_call.1} parent=5 // pred_check_branch
        %229 = sbr.rel (%p226) target = $region36
      $region35: #{tpu_custom_call.1} parent=5 // pred_region
        %s230 = ssub.s32 %s15, 1
        // Predicated region
        $region37: #{tpu_custom_call.1} parent=35 // pred_check
          %p231 = pneg %p36
        $region38: #{tpu_custom_call.1} parent=35 // pred_check_branch
          %233 = sbr.rel (%p231) target = $region40
        $region39: #{tpu_custom_call.1} parent=35 // pred_region
          %234 = dma.done [#allocation3], 256
        $region40: #{tpu_custom_call.1} parent=35 // pred_fallthru
          _
        // Predicated region
        $region41: #{tpu_custom_call.1} parent=35 // pred_check
          %p235 = pneg %p57
        $region42: #{tpu_custom_call.1} parent=35 // pred_check_branch
          %237 = sbr.rel (%p235) target = $region44
        $region43: #{tpu_custom_call.1} parent=35 // pred_region
          %238 = dma.done [#allocation6], 256
        $region44: #{tpu_custom_call.1} parent=35 // pred_fallthru
          _
        %s239 = sand.u32 %s20, 1
        %s240 = scalar_lea.sflag [#allocation3], %s239
        %s241 = sand.u32 %s70, 1
        %s242 = smul.addr %s241, 64
        %s243 = scalar_lea.vmem [#allocation7], %s242
        // Predicated region
        $region45: #{tpu_custom_call.1} parent=35 // pred_check
          %p244 = pneg %p83
        $region46: #{tpu_custom_call.1} parent=35 // pred_check_branch
          %246 = sbr.rel (%p244) target = $region48
        $region47: #{tpu_custom_call.1} parent=35 // pred_region
          %247 = dma.done %s240, 1024
        $region48: #{tpu_custom_call.1} parent=35 // pred_fallthru
          _
        %s248 = sand.u32 %s20, 1
        %s249 = scalar_lea.sflag [#allocation3], %s248
        %s250 = sand.u32 %s96, 1
        %s251 = smul.addr %s250, 64
        %s252 = scalar_lea.vmem [#allocation8], %s251
        // Predicated region
        $region49: #{tpu_custom_call.1} parent=35 // pred_check
          %p253 = pneg %p109
        $region50: #{tpu_custom_call.1} parent=35 // pred_check_branch
          %255 = sbr.rel (%p253) target = $region52
        $region51: #{tpu_custom_call.1} parent=35 // pred_region
          %256 = dma.done %s249, 1024
        $region52: #{tpu_custom_call.1} parent=35 // pred_fallthru
          _
        %p257 = pneg %p36
        %p258 = pneg %p33
        %p259 = pneg %p57
        %p260 = pneg %p54
        %s261 = sand.u32 %s20, 1
        %s262 = scalar_lea.sflag [#allocation3], %s261
        %s263 = sand.u32 %s70, 1
        %s264 = smul.addr %s263, 64
        %s265 = scalar_lea.vmem [#allocation7], %s264
        %p266 = pneg %p83
        %p267 = pneg %p80
        %s268 = sand.u32 %s20, 1
        %s269 = scalar_lea.sflag [#allocation3], %s268
        %s270 = sand.u32 %s96, 1
        %s271 = smul.addr %s270, 64
        %s272 = scalar_lea.vmem [#allocation8], %s271
        %p273 = pneg %p109
        %p274 = pneg %p106
        %p275 = pneg %p135
        %p276 = pneg %p132
        %s277 = sand.u32 %s122, 1
        %s278 = scalar_lea.sflag [#allocation4], %s277
        %s279 = sand.u32 %s122, 1
        %s280 = smul.addr %s279, 8
        %s281 = scalar_lea.vmem [#allocation9], %s280
        %s282 = smul.u32 4, %s20
        %s283 = smul.u32 4, %s20
        %v284 = vld [vmem:[%s243] sm:$0xff]
        %v285 = vld [vmem:[%s243 + $0x8] sm:$0xff]
        %v286 = vld [vmem:[%s243 + $0x10] sm:$0xff]
        %v287 = vld [vmem:[%s243 + $0x18] sm:$0xff]
        %v288 = vld [vmem:[%s243 + $0x20] sm:$0xff]
        %v289 = vld [vmem:[%s243 + $0x28] sm:$0xff]
        %v290 = vld [vmem:[%s243 + $0x30] sm:$0xff]
        %v291 = vld [vmem:[%s243 + $0x38] sm:$0xff]
        %v292 = vld [vmem:[%s252] sm:$0xff]
        %v293 = vld [vmem:[%s252 + $0x8] sm:$0xff]
        %v294 = vld [vmem:[%s252 + $0x10] sm:$0xff]
        %v295 = vld [vmem:[%s252 + $0x18] sm:$0xff]
        %v296 = vld [vmem:[%s252 + $0x20] sm:$0xff]
        %v297 = vld [vmem:[%s252 + $0x28] sm:$0xff]
        %v298 = vld [vmem:[%s252 + $0x30] sm:$0xff]
        %v299 = vld [vmem:[%s252 + $0x38] sm:$0xff]
        %v300 = vld [vmem:[#allocation5] sm:$0xff]
        %v301 = vld [vmem:[#allocation5 + $0x8] sm:$0xff]
        %vm302 = vcmask 130048
        %v304 = vsel %vm302, %v284, 0
        %v307 = vsel %vm302, %v285, 0
        %v310 = vsel %vm302, %v286, 0
        %v313 = vsel %vm302, %v287, 0
        %v316 = vsel %vm302, %v288, 0
        %v319 = vsel %vm302, %v289, 0
        %v322 = vsel %vm302, %v290, 0
        %v325 = vsel %vm302, %v291, 0
        %327 = vmatprep.subr.mxu0 0.0
        %328 = vmatpush1.msra.mxu0 %v300
        %329 = vmatprep.subr.mxu0 0.0
        %330 = vmatpush1.msra.mxu0 %v301
        %331 = vmatprep.subr.mxu0 0.0
        %332 = vmatpush1.msra.mxu0 0.0
        %333 = vmatprep.subr.mxu0 0.0
        %334 = vmatpush1.msra.mxu0 0.0
        %335 = vmatprep.subr.mxu0 0.0
        %336 = vmatpush1.msra.mxu0 0.0
        %337 = vmatprep.subr.mxu0 0.0
        %338 = vmatpush1.msra.mxu0 0.0
        %339 = vmatprep.subr.mxu0 0.0
        %340 = vmatpush1.msra.mxu0 0.0
        %341 = vmatprep.subr.mxu0 0.0
        %342 = vmatpush1.msra.mxu0 0.0
        %343 = vmatprep.subr.mxu0 0.0
        %344 = vmatpush1.msra.mxu0 0.0
        %345 = vmatprep.subr.mxu0 0.0
        %346 = vmatpush1.msra.mxu0 0.0
        %347 = vmatprep.subr.mxu0 0.0
        %348 = vmatpush1.msra.mxu0 0.0
        %349 = vmatprep.subr.mxu0 0.0
        %350 = vmatpush1.msra.mxu0 0.0
        %351 = vmatprep.subr.mxu0 0.0
        %352 = vmatpush1.msra.mxu0 0.0
        %353 = vmatprep.subr.mxu0 0.0
        %354 = vmatpush1.msra.mxu0 0.0
        %355 = vmatprep.subr.mxu0 0.0
        %356 = vmatpush1.msra.mxu0 0.0
        %357 = vmatprep.subr.mxu0 0.0
        %358 = vmatpush1.msra.mxu0 0.0
        %359 = vmatprep.subr.mxu0 0.0
        %360 = vmatpush1.msra.mxu0 0.0
        %361 = vmatprep.subr.mxu0 0.0
        %362 = vmatpush1.msra.mxu0 0.0
        %363 = vmatprep.subr.mxu0 0.0
        %364 = vmatpush1.msra.mxu0 0.0
        %365 = vmatprep.subr.mxu0 0.0
        %366 = vmatpush1.msra.mxu0 0.0
        %367 = vmatprep.subr.mxu0 0.0
        %368 = vmatpush1.msra.mxu0 0.0
        %369 = vmatprep.subr.mxu0 0.0
        %370 = vmatpush1.msra.mxu0 0.0
        %371 = vmatprep.subr.mxu0 0.0
        %372 = vmatpush1.msra.mxu0 0.0
        %373 = vmatprep.subr.mxu0 0.0
        %374 = vmatpush1.msra.mxu0 0.0
        %375 = vmatprep.subr.mxu0 0.0
        %376 = vmatpush1.msra.mxu0 0.0
        %377 = vmatprep.subr.mxu0 0.0
        %378 = vmatpush1.msra.mxu0 0.0
        %379 = vmatprep.subr.mxu0 0.0
        %380 = vmatpush1.msra.mxu0 0.0
        %381 = vmatprep.subr.mxu0 0.0
        %382 = vmatpush1.msra.mxu0 0.0
        %383 = vmatprep.subr.mxu0 0.0
        %384 = vmatpush1.msra.mxu0 0.0
        %385 = vmatprep.subr.mxu0 0.0
        %386 = vmatpush1.msra.mxu0 0.0
        %387 = vmatprep.subr.mxu0 0.0
        %388 = vmatpush1.msra.mxu0 0.0
        %389 = vmatprep.subr.mxu0 0.0
        %390 = vmatpush1.msra.mxu0 0.0
        %391 = vmatprep.mubr.f32.mxu0 0.0
        %392 = vmatmul.mubr.f32.gmra.mrb[0].mxu0 %v304
        %v393 = vpop.f32.mrb[0].mxu0
        %v394 = vadd.f32 0.0, %v393
        %v395 = vpop.f32.mrb[0].mxu0
        %396 = vmatprep.mubr.f32.mxu0 0.0
        %397 = vmatmul.mubr.f32.gmra.mrb[0].mxu0 %v307
        %v398 = vpop.f32.mrb[0].mxu0
        %v399 = vadd.f32 0.0, %v398
        %v400 = vpop.f32.mrb[0].mxu0
        %401 = vmatprep.mubr.f32.mxu0 0.0
        %402 = vmatmul.mubr.f32.gmra.mrb[0].mxu0 %v310
        %v403 = vpop.f32.mrb[0].mxu0
        %v404 = vadd.f32 0.0, %v403
        %v405 = vpop.f32.mrb[0].mxu0
        %406 = vmatprep.mubr.f32.mxu0 0.0
        %407 = vmatmul.mubr.f32.gmra.mrb[0].mxu0 %v313
        %v408 = vpop.f32.mrb[0].mxu0
        %v409 = vadd.f32 0.0, %v408
        %v410 = vpop.f32.mrb[0].mxu0
        %411 = vmatprep.mubr.f32.mxu0 0.0
        %412 = vmatmul.mubr.f32.gmra.mrb[0].mxu0 %v316
        %v413 = vpop.f32.mrb[0].mxu0
        %v414 = vadd.f32 0.0, %v413
        %v415 = vpop.f32.mrb[0].mxu0
        %416 = vmatprep.mubr.f32.mxu0 0.0
        %417 = vmatmul.mubr.f32.gmra.mrb[0].mxu0 %v319
        %v418 = vpop.f32.mrb[0].mxu0
        %v419 = vadd.f32 0.0, %v418
        %v420 = vpop.f32.mrb[0].mxu0
        %421 = vmatprep.mubr.f32.mxu0 0.0
        %422 = vmatmul.mubr.f32.gmra.mrb[0].mxu0 %v322
        %v423 = vpop.f32.mrb[0].mxu0
        %v424 = vadd.f32 0.0, %v423
        %v425 = vpop.f32.mrb[0].mxu0
        %426 = vmatprep.mubr.f32.mxu0 0.0
        %427 = vmatmul.mubr.f32.gmra.mrb[0].mxu0 %v325
        %v428 = vpop.f32.mrb[0].mxu0
        %v429 = vadd.f32 0.0, %v428
        %v430 = vpop.f32.mrb[0].mxu0
        %431 = vdwg.mxu0
        %v433 = vsel %vm302, %v292, 0
        %v436 = vsel %vm302, %v293, 0
        %v439 = vsel %vm302, %v294, 0
        %v442 = vsel %vm302, %v295, 0
        %v445 = vsel %vm302, %v296, 0
        %v448 = vsel %vm302, %v297, 0
        %v451 = vsel %vm302, %v298, 0
        %v454 = vsel %vm302, %v299, 0
        %456 = vmatprep.subr.mxu0 0.0
        %457 = vmatpush1.msra.mxu0 %v300
        %458 = vmatprep.subr.mxu0 0.0
        %459 = vmatpush1.msra.mxu0 %v301
        %460 = vmatprep.subr.mxu0 0.0
        %461 = vmatpush1.msra.mxu0 0.0
        %462 = vmatprep.subr.mxu0 0.0
        %463 = vmatpush1.msra.mxu0 0.0
        %464 = vmatprep.subr.mxu0 0.0
        %465 = vmatpush1.msra.mxu0 0.0
        %466 = vmatprep.subr.mxu0 0.0
        %467 = vmatpush1.msra.mxu0 0.0
        %468 = vmatprep.subr.mxu0 0.0
        %469 = vmatpush1.msra.mxu0 0.0
        %470 = vmatprep.subr.mxu0 0.0
        %471 = vmatpush1.msra.mxu0 0.0
        %472 = vmatprep.subr.mxu0 0.0
        %473 = vmatpush1.msra.mxu0 0.0
        %474 = vmatprep.subr.mxu0 0.0
        %475 = vmatpush1.msra.mxu0 0.0
        %476 = vmatprep.subr.mxu0 0.0
        %477 = vmatpush1.msra.mxu0 0.0
        %478 = vmatprep.subr.mxu0 0.0
        %479 = vmatpush1.msra.mxu0 0.0
        %480 = vmatprep.subr.mxu0 0.0
        %481 = vmatpush1.msra.mxu0 0.0
        %482 = vmatprep.subr.mxu0 0.0
        %483 = vmatpush1.msra.mxu0 0.0
        %484 = vmatprep.subr.mxu0 0.0
        %485 = vmatpush1.msra.mxu0 0.0
        %486 = vmatprep.subr.mxu0 0.0
        %487 = vmatpush1.msra.mxu0 0.0
        %488 = vmatprep.subr.mxu0 0.0
        %489 = vmatpush1.msra.mxu0 0.0
        %490 = vmatprep.subr.mxu0 0.0
        %491 = vmatpush1.msra.mxu0 0.0
        %492 = vmatprep.subr.mxu0 0.0
        %493 = vmatpush1.msra.mxu0 0.0
        %494 = vmatprep.subr.mxu0 0.0
        %495 = vmatpush1.msra.mxu0 0.0
        %496 = vmatprep.subr.mxu0 0.0
        %497 = vmatpush1.msra.mxu0 0.0
        %498 = vmatprep.subr.mxu0 0.0
        %499 = vmatpush1.msra.mxu0 0.0
        %500 = vmatprep.subr.mxu0 0.0
        %501 = vmatpush1.msra.mxu0 0.0
        %502 = vmatprep.subr.mxu0 0.0
        %503 = vmatpush1.msra.mxu0 0.0
        %504 = vmatprep.subr.mxu0 0.0
        %505 = vmatpush1.msra.mxu0 0.0
        %506 = vmatprep.subr.mxu0 0.0
        %507 = vmatpush1.msra.mxu0 0.0
        %508 = vmatprep.subr.mxu0 0.0
        %509 = vmatpush1.msra.mxu0 0.0
        %510 = vmatprep.subr.mxu0 0.0
        %511 = vmatpush1.msra.mxu0 0.0
        %512 = vmatprep.subr.mxu0 0.0
        %513 = vmatpush1.msra.mxu0 0.0
        %514 = vmatprep.subr.mxu0 0.0
        %515 = vmatpush1.msra.mxu0 0.0
        %516 = vmatprep.subr.mxu0 0.0
        %517 = vmatpush1.msra.mxu0 0.0
        %518 = vmatprep.subr.mxu0 0.0
        %519 = vmatpush1.msra.mxu0 0.0
        %520 = vmatprep.mubr.f32.mxu0 0.0
        %521 = vmatmul.mubr.f32.gmra.mrb[0].mxu0 %v433
        %v522 = vpop.f32.mrb[0].mxu0
        %v523 = vadd.f32 0.0, %v522
        %v524 = vpop.f32.mrb[0].mxu0
        %525 = vmatprep.mubr.f32.mxu0 0.0
        %526 = vmatmul.mubr.f32.gmra.mrb[0].mxu0 %v436
        %v527 = vpop.f32.mrb[0].mxu0
        %v528 = vadd.f32 0.0, %v527
        %v529 = vpop.f32.mrb[0].mxu0
        %530 = vmatprep.mubr.f32.mxu0 0.0
        %531 = vmatmul.mubr.f32.gmra.mrb[0].mxu0 %v439
        %v532 = vpop.f32.mrb[0].mxu0
        %v533 = vadd.f32 0.0, %v532
        %v534 = vpop.f32.mrb[0].mxu0
        %535 = vmatprep.mubr.f32.mxu0 0.0
        %536 = vmatmul.mubr.f32.gmra.mrb[0].mxu0 %v442
        %v537 = vpop.f32.mrb[0].mxu0
        %v538 = vadd.f32 0.0, %v537
        %v539 = vpop.f32.mrb[0].mxu0
        %540 = vmatprep.mubr.f32.mxu0 0.0
        %541 = vmatmul.mubr.f32.gmra.mrb[0].mxu0 %v445
        %v542 = vpop.f32.mrb[0].mxu0
        %v543 = vadd.f32 0.0, %v542
        %v544 = vpop.f32.mrb[0].mxu0
        %545 = vmatprep.mubr.f32.mxu0 0.0
        %546 = vmatmul.mubr.f32.gmra.mrb[0].mxu0 %v448
        %v547 = vpop.f32.mrb[0].mxu0
        %v548 = vadd.f32 0.0, %v547
        %v549 = vpop.f32.mrb[0].mxu0
        %550 = vmatprep.mubr.f32.mxu0 0.0
        %551 = vmatmul.mubr.f32.gmra.mrb[0].mxu0 %v451
        %v552 = vpop.f32.mrb[0].mxu0
        %v553 = vadd.f32 0.0, %v552
        %v554 = vpop.f32.mrb[0].mxu0
        %555 = vmatprep.mubr.f32.mxu0 0.0
        %556 = vmatmul.mubr.f32.gmra.mrb[0].mxu0 %v454
        %v557 = vpop.f32.mrb[0].mxu0
        %v558 = vadd.f32 0.0, %v557
        %v559 = vpop.f32.mrb[0].mxu0
        %560 = vdwg.mxu0
        %v561 = vmul.f32 %v284, %v284
        %v562 = vmul.f32 %v285, %v285
        %v563 = vmul.f32 %v286, %v286
        %v564 = vmul.f32 %v287, %v287
        %v565 = vmul.f32 %v288, %v288
        %v566 = vmul.f32 %v289, %v289
        %v567 = vmul.f32 %v290, %v290
        %v568 = vmul.f32 %v291, %v291
        %v570 = vsel %vm302, %v561, 0
        %v573 = vsel %vm302, %v562, 0
        %v576 = vsel %vm302, %v563, 0
        %v579 = vsel %vm302, %v564, 0
        %v582 = vsel %vm302, %v565, 0
        %v585 = vsel %vm302, %v566, 0
        %v588 = vsel %vm302, %v567, 0
        %v591 = vsel %vm302, %v568, 0
        %593 = vmatprep.subr.mxu0 0.0
        %594 = vmatpush1.msra.mxu0 %v300
        %595 = vmatprep.subr.mxu0 0.0
        %596 = vmatpush1.msra.mxu0 %v301
        %597 = vmatprep.subr.mxu0 0.0
        %598 = vmatpush1.msra.mxu0 0.0
        %599 = vmatprep.subr.mxu0 0.0
        %600 = vmatpush1.msra.mxu0 0.0
        %601 = vmatprep.subr.mxu0 0.0
        %602 = vmatpush1.msra.mxu0 0.0
        %603 = vmatprep.subr.mxu0 0.0
        %604 = vmatpush1.msra.mxu0 0.0
        %605 = vmatprep.subr.mxu0 0.0
        %606 = vmatpush1.msra.mxu0 0.0
        %607 = vmatprep.subr.mxu0 0.0
        %608 = vmatpush1.msra.mxu0 0.0
        %609 = vmatprep.subr.mxu0 0.0
        %610 = vmatpush1.msra.mxu0 0.0
        %611 = vmatprep.subr.mxu0 0.0
        %612 = vmatpush1.msra.mxu0 0.0
        %613 = vmatprep.subr.mxu0 0.0
        %614 = vmatpush1.msra.mxu0 0.0
        %615 = vmatprep.subr.mxu0 0.0
        %616 = vmatpush1.msra.mxu0 0.0
        %617 = vmatprep.subr.mxu0 0.0
        %618 = vmatpush1.msra.mxu0 0.0
        %619 = vmatprep.subr.mxu0 0.0
        %620 = vmatpush1.msra.mxu0 0.0
        %621 = vmatprep.subr.mxu0 0.0
        %622 = vmatpush1.msra.mxu0 0.0
        %623 = vmatprep.subr.mxu0 0.0
        %624 = vmatpush1.msra.mxu0 0.0
        %625 = vmatprep.subr.mxu0 0.0
        %626 = vmatpush1.msra.mxu0 0.0
        %627 = vmatprep.subr.mxu0 0.0
        %628 = vmatpush1.msra.mxu0 0.0
        %629 = vmatprep.subr.mxu0 0.0
        %630 = vmatpush1.msra.mxu0 0.0
        %631 = vmatprep.subr.mxu0 0.0
        %632 = vmatpush1.msra.mxu0 0.0
        %633 = vmatprep.subr.mxu0 0.0
        %634 = vmatpush1.msra.mxu0 0.0
        %635 = vmatprep.subr.mxu0 0.0
        %636 = vmatpush1.msra.mxu0 0.0
        %637 = vmatprep.subr.mxu0 0.0
        %638 = vmatpush1.msra.mxu0 0.0
        %639 = vmatprep.subr.mxu0 0.0
        %640 = vmatpush1.msra.mxu0 0.0
        %641 = vmatprep.subr.mxu0 0.0
        %642 = vmatpush1.msra.mxu0 0.0
        %643 = vmatprep.subr.mxu0 0.0
        %644 = vmatpush1.msra.mxu0 0.0
        %645 = vmatprep.subr.mxu0 0.0
        %646 = vmatpush1.msra.mxu0 0.0
        %647 = vmatprep.subr.mxu0 0.0
        %648 = vmatpush1.msra.mxu0 0.0
        %649 = vmatprep.subr.mxu0 0.0
        %650 = vmatpush1.msra.mxu0 0.0
        %651 = vmatprep.subr.mxu0 0.0
        %652 = vmatpush1.msra.mxu0 0.0
        %653 = vmatprep.subr.mxu0 0.0
        %654 = vmatpush1.msra.mxu0 0.0
        %655 = vmatprep.subr.mxu0 0.0
        %656 = vmatpush1.msra.mxu0 0.0
        %657 = vmatprep.mubr.f32.mxu0 0.0
        %658 = vmatmul.mubr.f32.gmra.mrb[0].mxu0 %v570
        %v659 = vpop.f32.mrb[0].mxu0
        %v660 = vadd.f32 0.0, %v659
        %v661 = vpop.f32.mrb[0].mxu0
        %662 = vmatprep.mubr.f32.mxu0 0.0
        %663 = vmatmul.mubr.f32.gmra.mrb[0].mxu0 %v573
        %v664 = vpop.f32.mrb[0].mxu0
        %v665 = vadd.f32 0.0, %v664
        %v666 = vpop.f32.mrb[0].mxu0
        %667 = vmatprep.mubr.f32.mxu0 0.0
        %668 = vmatmul.mubr.f32.gmra.mrb[0].mxu0 %v576
        %v669 = vpop.f32.mrb[0].mxu0
        %v670 = vadd.f32 0.0, %v669
        %v671 = vpop.f32.mrb[0].mxu0
        %672 = vmatprep.mubr.f32.mxu0 0.0
        %673 = vmatmul.mubr.f32.gmra.mrb[0].mxu0 %v579
        %v674 = vpop.f32.mrb[0].mxu0
        %v675 = vadd.f32 0.0, %v674
        %v676 = vpop.f32.mrb[0].mxu0
        %677 = vmatprep.mubr.f32.mxu0 0.0
        %678 = vmatmul.mubr.f32.gmra.mrb[0].mxu0 %v582
        %v679 = vpop.f32.mrb[0].mxu0
        %v680 = vadd.f32 0.0, %v679
        %v681 = vpop.f32.mrb[0].mxu0
        %682 = vmatprep.mubr.f32.mxu0 0.0
        %683 = vmatmul.mubr.f32.gmra.mrb[0].mxu0 %v585
        %v684 = vpop.f32.mrb[0].mxu0
        %v685 = vadd.f32 0.0, %v684
        %v686 = vpop.f32.mrb[0].mxu0
        %687 = vmatprep.mubr.f32.mxu0 0.0
        %688 = vmatmul.mubr.f32.gmra.mrb[0].mxu0 %v588
        %v689 = vpop.f32.mrb[0].mxu0
        %v690 = vadd.f32 0.0, %v689
        %v691 = vpop.f32.mrb[0].mxu0
        %692 = vmatprep.mubr.f32.mxu0 0.0
        %693 = vmatmul.mubr.f32.gmra.mrb[0].mxu0 %v591
        %v694 = vpop.f32.mrb[0].mxu0
        %v695 = vadd.f32 0.0, %v694
        %v696 = vpop.f32.mrb[0].mxu0
        %697 = vdwg.mxu0
        %v698 = vmul.f32 %v292, %v292
        %v699 = vmul.f32 %v293, %v293
        %v700 = vmul.f32 %v294, %v294
        %v701 = vmul.f32 %v295, %v295
        %v702 = vmul.f32 %v296, %v296
        %v703 = vmul.f32 %v297, %v297
        %v704 = vmul.f32 %v298, %v298
        %v705 = vmul.f32 %v299, %v299
        %v707 = vsel %vm302, %v698, 0
        %v710 = vsel %vm302, %v699, 0
        %v713 = vsel %vm302, %v700, 0
        %v716 = vsel %vm302, %v701, 0
        %v719 = vsel %vm302, %v702, 0
        %v722 = vsel %vm302, %v703, 0
        %v725 = vsel %vm302, %v704, 0
        %v728 = vsel %vm302, %v705, 0
        %730 = vmatprep.subr.mxu0 0.0
        %731 = vmatpush1.msra.mxu0 %v300
        %732 = vmatprep.subr.mxu0 0.0
        %733 = vmatpush1.msra.mxu0 %v301
        %734 = vmatprep.subr.mxu0 0.0
        %735 = vmatpush1.msra.mxu0 0.0
        %736 = vmatprep.subr.mxu0 0.0
        %737 = vmatpush1.msra.mxu0 0.0
        %738 = vmatprep.subr.mxu0 0.0
        %739 = vmatpush1.msra.mxu0 0.0
        %740 = vmatprep.subr.mxu0 0.0
        %741 = vmatpush1.msra.mxu0 0.0
        %742 = vmatprep.subr.mxu0 0.0
        %743 = vmatpush1.msra.mxu0 0.0
        %744 = vmatprep.subr.mxu0 0.0
        %745 = vmatpush1.msra.mxu0 0.0
        %746 = vmatprep.subr.mxu0 0.0
        %747 = vmatpush1.msra.mxu0 0.0
        %748 = vmatprep.subr.mxu0 0.0
        %749 = vmatpush1.msra.mxu0 0.0
        %750 = vmatprep.subr.mxu0 0.0
        %751 = vmatpush1.msra.mxu0 0.0
        %752 = vmatprep.subr.mxu0 0.0
        %753 = vmatpush1.msra.mxu0 0.0
        %754 = vmatprep.subr.mxu0 0.0
        %755 = vmatpush1.msra.mxu0 0.0
        %756 = vmatprep.subr.mxu0 0.0
        %757 = vmatpush1.msra.mxu0 0.0
        %758 = vmatprep.subr.mxu0 0.0
        %759 = vmatpush1.msra.mxu0 0.0
        %760 = vmatprep.subr.mxu0 0.0
        %761 = vmatpush1.msra.mxu0 0.0
        %762 = vmatprep.subr.mxu0 0.0
        %763 = vmatpush1.msra.mxu0 0.0
        %764 = vmatprep.subr.mxu0 0.0
        %765 = vmatpush1.msra.mxu0 0.0
        %766 = vmatprep.subr.mxu0 0.0
        %767 = vmatpush1.msra.mxu0 0.0
        %768 = vmatprep.subr.mxu0 0.0
        %769 = vmatpush1.msra.mxu0 0.0
        %770 = vmatprep.subr.mxu0 0.0
        %771 = vmatpush1.msra.mxu0 0.0
        %772 = vmatprep.subr.mxu0 0.0
        %773 = vmatpush1.msra.mxu0 0.0
        %774 = vmatprep.subr.mxu0 0.0
        %775 = vmatpush1.msra.mxu0 0.0
        %776 = vmatprep.subr.mxu0 0.0
        %777 = vmatpush1.msra.mxu0 0.0
        %778 = vmatprep.subr.mxu0 0.0
        %779 = vmatpush1.msra.mxu0 0.0
        %780 = vmatprep.subr.mxu0 0.0
        %781 = vmatpush1.msra.mxu0 0.0
        %782 = vmatprep.subr.mxu0 0.0
        %783 = vmatpush1.msra.mxu0 0.0
        %784 = vmatprep.subr.mxu0 0.0
        %785 = vmatpush1.msra.mxu0 0.0
        %786 = vmatprep.subr.mxu0 0.0
        %787 = vmatpush1.msra.mxu0 0.0
        %788 = vmatprep.subr.mxu0 0.0
        %789 = vmatpush1.msra.mxu0 0.0
        %790 = vmatprep.subr.mxu0 0.0
        %791 = vmatpush1.msra.mxu0 0.0
        %792 = vmatprep.subr.mxu0 0.0
        %793 = vmatpush1.msra.mxu0 0.0
        %794 = vmatprep.mubr.f32.mxu0 0.0
        %795 = vmatmul.mubr.f32.gmra.mrb[0].mxu0 %v707
        %v796 = vpop.f32.mrb[0].mxu0
        %v797 = vadd.f32 0.0, %v796
        %v798 = vpop.f32.mrb[0].mxu0
        %799 = vmatprep.mubr.f32.mxu0 0.0
        %800 = vmatmul.mubr.f32.gmra.mrb[0].mxu0 %v710
        %v801 = vpop.f32.mrb[0].mxu0
        %v802 = vadd.f32 0.0, %v801
        %v803 = vpop.f32.mrb[0].mxu0
        %804 = vmatprep.mubr.f32.mxu0 0.0
        %805 = vmatmul.mubr.f32.gmra.mrb[0].mxu0 %v713
        %v806 = vpop.f32.mrb[0].mxu0
        %v807 = vadd.f32 0.0, %v806
        %v808 = vpop.f32.mrb[0].mxu0
        %809 = vmatprep.mubr.f32.mxu0 0.0
        %810 = vmatmul.mubr.f32.gmra.mrb[0].mxu0 %v716
        %v811 = vpop.f32.mrb[0].mxu0
        %v812 = vadd.f32 0.0, %v811
        %v813 = vpop.f32.mrb[0].mxu0
        %814 = vmatprep.mubr.f32.mxu0 0.0
        %815 = vmatmul.mubr.f32.gmra.mrb[0].mxu0 %v719
        %v816 = vpop.f32.mrb[0].mxu0
        %v817 = vadd.f32 0.0, %v816
        %v818 = vpop.f32.mrb[0].mxu0
        %819 = vmatprep.mubr.f32.mxu0 0.0
        %820 = vmatmul.mubr.f32.gmra.mrb[0].mxu0 %v722
        %v821 = vpop.f32.mrb[0].mxu0
        %v822 = vadd.f32 0.0, %v821
        %v823 = vpop.f32.mrb[0].mxu0
        %824 = vmatprep.mubr.f32.mxu0 0.0
        %825 = vmatmul.mubr.f32.gmra.mrb[0].mxu0 %v725
        %v826 = vpop.f32.mrb[0].mxu0
        %v827 = vadd.f32 0.0, %v826
        %v828 = vpop.f32.mrb[0].mxu0
        %829 = vmatprep.mubr.f32.mxu0 0.0
        %830 = vmatmul.mubr.f32.gmra.mrb[0].mxu0 %v728
        %v831 = vpop.f32.mrb[0].mxu0
        %v832 = vadd.f32 0.0, %v831
        %v833 = vpop.f32.mrb[0].mxu0
        %834 = vdwg.mxu0
        %v835 = vmul.f32 %v284, %v292
        %v836 = vmul.f32 %v285, %v293
        %v837 = vmul.f32 %v286, %v294
        %v838 = vmul.f32 %v287, %v295
        %v839 = vmul.f32 %v288, %v296
        %v840 = vmul.f32 %v289, %v297
        %v841 = vmul.f32 %v290, %v298
        %v842 = vmul.f32 %v291, %v299
        %v844 = vsel %vm302, %v835, 0
        %v847 = vsel %vm302, %v836, 0
        %v850 = vsel %vm302, %v837, 0
        %v853 = vsel %vm302, %v838, 0
        %v856 = vsel %vm302, %v839, 0
        %v859 = vsel %vm302, %v840, 0
        %v862 = vsel %vm302, %v841, 0
        %v865 = vsel %vm302, %v842, 0
        %867 = vmatprep.subr.mxu0 0.0
        %868 = vmatpush1.msra.mxu0 %v300
        %869 = vmatprep.subr.mxu0 0.0
        %870 = vmatpush1.msra.mxu0 %v301
        %871 = vmatprep.subr.mxu0 0.0
        %872 = vmatpush1.msra.mxu0 0.0
        %873 = vmatprep.subr.mxu0 0.0
        %874 = vmatpush1.msra.mxu0 0.0
        %875 = vmatprep.subr.mxu0 0.0
        %876 = vmatpush1.msra.mxu0 0.0
        %877 = vmatprep.subr.mxu0 0.0
        %878 = vmatpush1.msra.mxu0 0.0
        %879 = vmatprep.subr.mxu0 0.0
        %880 = vmatpush1.msra.mxu0 0.0
        %881 = vmatprep.subr.mxu0 0.0
        %882 = vmatpush1.msra.mxu0 0.0
        %883 = vmatprep.subr.mxu0 0.0
        %884 = vmatpush1.msra.mxu0 0.0
        %885 = vmatprep.subr.mxu0 0.0
        %886 = vmatpush1.msra.mxu0 0.0
        %887 = vmatprep.subr.mxu0 0.0
        %888 = vmatpush1.msra.mxu0 0.0
        %889 = vmatprep.subr.mxu0 0.0
        %890 = vmatpush1.msra.mxu0 0.0
        %891 = vmatprep.subr.mxu0 0.0
        %892 = vmatpush1.msra.mxu0 0.0
        %893 = vmatprep.subr.mxu0 0.0
        %894 = vmatpush1.msra.mxu0 0.0
        %895 = vmatprep.subr.mxu0 0.0
        %896 = vmatpush1.msra.mxu0 0.0
        %897 = vmatprep.subr.mxu0 0.0
        %898 = vmatpush1.msra.mxu0 0.0
        %899 = vmatprep.subr.mxu0 0.0
        %900 = vmatpush1.msra.mxu0 0.0
        %901 = vmatprep.subr.mxu0 0.0
        %902 = vmatpush1.msra.mxu0 0.0
        %903 = vmatprep.subr.mxu0 0.0
        %904 = vmatpush1.msra.mxu0 0.0
        %905 = vmatprep.subr.mxu0 0.0
        %906 = vmatpush1.msra.mxu0 0.0
        %907 = vmatprep.subr.mxu0 0.0
        %908 = vmatpush1.msra.mxu0 0.0
        %909 = vmatprep.subr.mxu0 0.0
        %910 = vmatpush1.msra.mxu0 0.0
        %911 = vmatprep.subr.mxu0 0.0
        %912 = vmatpush1.msra.mxu0 0.0
        %913 = vmatprep.subr.mxu0 0.0
        %914 = vmatpush1.msra.mxu0 0.0
        %915 = vmatprep.subr.mxu0 0.0
        %916 = vmatpush1.msra.mxu0 0.0
        %917 = vmatprep.subr.mxu0 0.0
        %918 = vmatpush1.msra.mxu0 0.0
        %919 = vmatprep.subr.mxu0 0.0
        %920 = vmatpush1.msra.mxu0 0.0
        %921 = vmatprep.subr.mxu0 0.0
        %922 = vmatpush1.msra.mxu0 0.0
        %923 = vmatprep.subr.mxu0 0.0
        %924 = vmatpush1.msra.mxu0 0.0
        %925 = vmatprep.subr.mxu0 0.0
        %926 = vmatpush1.msra.mxu0 0.0
        %927 = vmatprep.subr.mxu0 0.0
        %928 = vmatpush1.msra.mxu0 0.0
        %929 = vmatprep.subr.mxu0 0.0
        %930 = vmatpush1.msra.mxu0 0.0
        %931 = vmatprep.mubr.f32.mxu0 0.0
        %932 = vmatmul.mubr.f32.gmra.mrb[0].mxu0 %v844
        %v933 = vpop.f32.mrb[0].mxu0
        %v934 = vadd.f32 0.0, %v933
        %v935 = vpop.f32.mrb[0].mxu0
        %936 = vmatprep.mubr.f32.mxu0 0.0
        %937 = vmatmul.mubr.f32.gmra.mrb[0].mxu0 %v847
        %v938 = vpop.f32.mrb[0].mxu0
        %v939 = vadd.f32 0.0, %v938
        %v940 = vpop.f32.mrb[0].mxu0
        %941 = vmatprep.mubr.f32.mxu0 0.0
        %942 = vmatmul.mubr.f32.gmra.mrb[0].mxu0 %v850
        %v943 = vpop.f32.mrb[0].mxu0
        %v944 = vadd.f32 0.0, %v943
        %v945 = vpop.f32.mrb[0].mxu0
        %946 = vmatprep.mubr.f32.mxu0 0.0
        %947 = vmatmul.mubr.f32.gmra.mrb[0].mxu0 %v853
        %v948 = vpop.f32.mrb[0].mxu0
        %v949 = vadd.f32 0.0, %v948
        %v950 = vpop.f32.mrb[0].mxu0
        %951 = vmatprep.mubr.f32.mxu0 0.0
        %952 = vmatmul.mubr.f32.gmra.mrb[0].mxu0 %v856
        %v953 = vpop.f32.mrb[0].mxu0
        %v954 = vadd.f32 0.0, %v953
        %v955 = vpop.f32.mrb[0].mxu0
        %956 = vmatprep.mubr.f32.mxu0 0.0
        %957 = vmatmul.mubr.f32.gmra.mrb[0].mxu0 %v859
        %v958 = vpop.f32.mrb[0].mxu0
        %v959 = vadd.f32 0.0, %v958
        %v960 = vpop.f32.mrb[0].mxu0
        %961 = vmatprep.mubr.f32.mxu0 0.0
        %962 = vmatmul.mubr.f32.gmra.mrb[0].mxu0 %v862
        %v963 = vpop.f32.mrb[0].mxu0
        %v964 = vadd.f32 0.0, %v963
        %v965 = vpop.f32.mrb[0].mxu0
        %966 = vmatprep.mubr.f32.mxu0 0.0
        %967 = vmatmul.mubr.f32.gmra.mrb[0].mxu0 %v865
        %v968 = vpop.f32.mrb[0].mxu0
        %v969 = vadd.f32 0.0, %v968
        %v970 = vpop.f32.mrb[0].mxu0
        %971 = vdwg.mxu0
        %v972 = vld [vmem:[#allocation2] sm:$0xff]
        %v973 = vld [vmem:[#allocation2 + $0x8] sm:$0xff]
        %v975 = vsel %vm302, %v972, 0
        %v978 = vsel %vm302, %v973, 0
        %980 = vmatprep.subr.mxu0 0.0
        %981 = vmatpush1.msra.mxu0 %v394
        %982 = vmatprep.subr.mxu0 0.0
        %983 = vmatpush1.msra.mxu0 %v399
        %984 = vmatprep.subr.mxu0 0.0
        %985 = vmatpush1.msra.mxu0 0.0
        %986 = vmatprep.subr.mxu0 0.0
        %987 = vmatpush1.msra.mxu0 0.0
        %988 = vmatprep.subr.mxu0 0.0
        %989 = vmatpush1.msra.mxu0 0.0
        %990 = vmatprep.subr.mxu0 0.0
        %991 = vmatpush1.msra.mxu0 0.0
        %992 = vmatprep.subr.mxu0 0.0
        %993 = vmatpush1.msra.mxu0 0.0
        %994 = vmatprep.subr.mxu0 0.0
        %995 = vmatpush1.msra.mxu0 0.0
        %996 = vmatprep.subr.mxu0 0.0
        %997 = vmatpush1.msra.mxu0 0.0
        %998 = vmatprep.subr.mxu0 0.0
        %999 = vmatpush1.msra.mxu0 0.0
        %1000 = vmatprep.subr.mxu0 0.0
        %1001 = vmatpush1.msra.mxu0 0.0
        %1002 = vmatprep.subr.mxu0 0.0
        %1003 = vmatpush1.msra.mxu0 0.0
        %1004 = vmatprep.subr.mxu0 0.0
        %1005 = vmatpush1.msra.mxu0 0.0
        %1006 = vmatprep.subr.mxu0 0.0
        %1007 = vmatpush1.msra.mxu0 0.0
        %1008 = vmatprep.subr.mxu0 0.0
        %1009 = vmatpush1.msra.mxu0 0.0
        %1010 = vmatprep.subr.mxu0 0.0
        %1011 = vmatpush1.msra.mxu0 0.0
        %1012 = vmatprep.subr.mxu0 0.0
        %1013 = vmatpush1.msra.mxu0 0.0
        %1014 = vmatprep.subr.mxu0 0.0
        %1015 = vmatpush1.msra.mxu0 0.0
        %1016 = vmatprep.subr.mxu0 0.0
        %1017 = vmatpush1.msra.mxu0 0.0
        %1018 = vmatprep.subr.mxu0 0.0
        %1019 = vmatpush1.msra.mxu0 0.0
        %1020 = vmatprep.subr.mxu0 0.0
        %1021 = vmatpush1.msra.mxu0 0.0
        %1022 = vmatprep.subr.mxu0 0.0
        %1023 = vmatpush1.msra.mxu0 0.0
        %1024 = vmatprep.subr.mxu0 0.0
        %1025 = vmatpush1.msra.mxu0 0.0
        %1026 = vmatprep.subr.mxu0 0.0
        %1027 = vmatpush1.msra.mxu0 0.0
        %1028 = vmatprep.subr.mxu0 0.0
        %1029 = vmatpush1.msra.mxu0 0.0
        %1030 = vmatprep.subr.mxu0 0.0
        %1031 = vmatpush1.msra.mxu0 0.0
        %1032 = vmatprep.subr.mxu0 0.0
        %1033 = vmatpush1.msra.mxu0 0.0
        %1034 = vmatprep.subr.mxu0 0.0
        %1035 = vmatpush1.msra.mxu0 0.0
        %1036 = vmatprep.subr.mxu0 0.0
        %1037 = vmatpush1.msra.mxu0 0.0
        %1038 = vmatprep.subr.mxu0 0.0
        %1039 = vmatpush1.msra.mxu0 0.0
        %1040 = vmatprep.subr.mxu0 0.0
        %1041 = vmatpush1.msra.mxu0 0.0
        %1042 = vmatprep.subr.mxu0 0.0
        %1043 = vmatpush1.msra.mxu0 0.0
        %1044 = vmatprep.mubr.f32.mxu0 0.0
        %1045 = vmatmul.mubr.f32.gmra.mrb[0].mxu0 %v975
        %v1046 = vpop.f32.mrb[0].mxu0
        %v1047 = vadd.f32 0.0, %v1046
        %v1048 = vpop.f32.mrb[0].mxu0
        %1049 = vmatprep.mubr.f32.mxu0 0.0
        %1050 = vmatmul.mubr.f32.gmra.mrb[0].mxu0 %v978
        %v1051 = vpop.f32.mrb[0].mxu0
        %v1052 = vadd.f32 0.0, %v1051
        %v1053 = vpop.f32.mrb[0].mxu0
        %1054 = vdwg.mxu0
        %1055 = vmatprep.subr.mxu0 0.0
        %1056 = vmatpush1.msra.mxu0 %v404
        %1057 = vmatprep.subr.mxu0 0.0
        %1058 = vmatpush1.msra.mxu0 %v409
        %1059 = vmatprep.subr.mxu0 0.0
        %1060 = vmatpush1.msra.mxu0 0.0
        %1061 = vmatprep.subr.mxu0 0.0
        %1062 = vmatpush1.msra.mxu0 0.0
        %1063 = vmatprep.subr.mxu0 0.0
        %1064 = vmatpush1.msra.mxu0 0.0
        %1065 = vmatprep.subr.mxu0 0.0
        %1066 = vmatpush1.msra.mxu0 0.0
        %1067 = vmatprep.subr.mxu0 0.0
        %1068 = vmatpush1.msra.mxu0 0.0
        %1069 = vmatprep.subr.mxu0 0.0
        %1070 = vmatpush1.msra.mxu0 0.0
        %1071 = vmatprep.subr.mxu0 0.0
        %1072 = vmatpush1.msra.mxu0 0.0
        %1073 = vmatprep.subr.mxu0 0.0
        %1074 = vmatpush1.msra.mxu0 0.0
        %1075 = vmatprep.subr.mxu0 0.0
        %1076 = vmatpush1.msra.mxu0 0.0
        %1077 = vmatprep.subr.mxu0 0.0
        %1078 = vmatpush1.msra.mxu0 0.0
        %1079 = vmatprep.subr.mxu0 0.0
        %1080 = vmatpush1.msra.mxu0 0.0
        %1081 = vmatprep.subr.mxu0 0.0
        %1082 = vmatpush1.msra.mxu0 0.0
        %1083 = vmatprep.subr.mxu0 0.0
        %1084 = vmatpush1.msra.mxu0 0.0
        %1085 = vmatprep.subr.mxu0 0.0
        %1086 = vmatpush1.msra.mxu0 0.0
        %1087 = vmatprep.subr.mxu0 0.0
        %1088 = vmatpush1.msra.mxu0 0.0
        %1089 = vmatprep.subr.mxu0 0.0
        %1090 = vmatpush1.msra.mxu0 0.0
        %1091 = vmatprep.subr.mxu0 0.0
        %1092 = vmatpush1.msra.mxu0 0.0
        %1093 = vmatprep.subr.mxu0 0.0
        %1094 = vmatpush1.msra.mxu0 0.0
        %1095 = vmatprep.subr.mxu0 0.0
        %1096 = vmatpush1.msra.mxu0 0.0
        %1097 = vmatprep.subr.mxu0 0.0
        %1098 = vmatpush1.msra.mxu0 0.0
        %1099 = vmatprep.subr.mxu0 0.0
        %1100 = vmatpush1.msra.mxu0 0.0
        %1101 = vmatprep.subr.mxu0 0.0
        %1102 = vmatpush1.msra.mxu0 0.0
        %1103 = vmatprep.subr.mxu0 0.0
        %1104 = vmatpush1.msra.mxu0 0.0
        %1105 = vmatprep.subr.mxu0 0.0
        %1106 = vmatpush1.msra.mxu0 0.0
        %1107 = vmatprep.subr.mxu0 0.0
        %1108 = vmatpush1.msra.mxu0 0.0
        %1109 = vmatprep.subr.mxu0 0.0
        %1110 = vmatpush1.msra.mxu0 0.0
        %1111 = vmatprep.subr.mxu0 0.0
        %1112 = vmatpush1.msra.mxu0 0.0
        %1113 = vmatprep.subr.mxu0 0.0
        %1114 = vmatpush1.msra.mxu0 0.0
        %1115 = vmatprep.subr.mxu0 0.0
        %1116 = vmatpush1.msra.mxu0 0.0
        %1117 = vmatprep.subr.mxu0 0.0
        %1118 = vmatpush1.msra.mxu0 0.0
        %1119 = vmatprep.mubr.f32.mxu0 0.0
        %1120 = vmatmul.mubr.f32.gmra.mrb[0].mxu0 %v975
        %v1121 = vpop.f32.mrb[0].mxu0
        %v1122 = vadd.f32 0.0, %v1121
        %v1123 = vpop.f32.mrb[0].mxu0
        %1124 = vmatprep.mubr.f32.mxu0 0.0
        %1125 = vmatmul.mubr.f32.gmra.mrb[0].mxu0 %v978
        %v1126 = vpop.f32.mrb[0].mxu0
        %v1127 = vadd.f32 0.0, %v1126
        %v1128 = vpop.f32.mrb[0].mxu0
        %1129 = vdwg.mxu0
        %1130 = vmatprep.subr.mxu0 0.0
        %1131 = vmatpush1.msra.mxu0 %v414
        %1132 = vmatprep.subr.mxu0 0.0
        %1133 = vmatpush1.msra.mxu0 %v419
        %1134 = vmatprep.subr.mxu0 0.0
        %1135 = vmatpush1.msra.mxu0 0.0
        %1136 = vmatprep.subr.mxu0 0.0
        %1137 = vmatpush1.msra.mxu0 0.0
        %1138 = vmatprep.subr.mxu0 0.0
        %1139 = vmatpush1.msra.mxu0 0.0
        %1140 = vmatprep.subr.mxu0 0.0
        %1141 = vmatpush1.msra.mxu0 0.0
        %1142 = vmatprep.subr.mxu0 0.0
        %1143 = vmatpush1.msra.mxu0 0.0
        %1144 = vmatprep.subr.mxu0 0.0
        %1145 = vmatpush1.msra.mxu0 0.0
        %1146 = vmatprep.subr.mxu0 0.0
        %1147 = vmatpush1.msra.mxu0 0.0
        %1148 = vmatprep.subr.mxu0 0.0
        %1149 = vmatpush1.msra.mxu0 0.0
        %1150 = vmatprep.subr.mxu0 0.0
        %1151 = vmatpush1.msra.mxu0 0.0
        %1152 = vmatprep.subr.mxu0 0.0
        %1153 = vmatpush1.msra.mxu0 0.0
        %1154 = vmatprep.subr.mxu0 0.0
        %1155 = vmatpush1.msra.mxu0 0.0
        %1156 = vmatprep.subr.mxu0 0.0
        %1157 = vmatpush1.msra.mxu0 0.0
        %1158 = vmatprep.subr.mxu0 0.0
        %1159 = vmatpush1.msra.mxu0 0.0
        %1160 = vmatprep.subr.mxu0 0.0
        %1161 = vmatpush1.msra.mxu0 0.0
        %1162 = vmatprep.subr.mxu0 0.0
        %1163 = vmatpush1.msra.mxu0 0.0
        %1164 = vmatprep.subr.mxu0 0.0
        %1165 = vmatpush1.msra.mxu0 0.0
        %1166 = vmatprep.subr.mxu0 0.0
        %1167 = vmatpush1.msra.mxu0 0.0
        %1168 = vmatprep.subr.mxu0 0.0
        %1169 = vmatpush1.msra.mxu0 0.0
        %1170 = vmatprep.subr.mxu0 0.0
        %1171 = vmatpush1.msra.mxu0 0.0
        %1172 = vmatprep.subr.mxu0 0.0
        %1173 = vmatpush1.msra.mxu0 0.0
        %1174 = vmatprep.subr.mxu0 0.0
        %1175 = vmatpush1.msra.mxu0 0.0
        %1176 = vmatprep.subr.mxu0 0.0
        %1177 = vmatpush1.msra.mxu0 0.0
        %1178 = vmatprep.subr.mxu0 0.0
        %1179 = vmatpush1.msra.mxu0 0.0
        %1180 = vmatprep.subr.mxu0 0.0
        %1181 = vmatpush1.msra.mxu0 0.0
        %1182 = vmatprep.subr.mxu0 0.0
        %1183 = vmatpush1.msra.mxu0 0.0
        %1184 = vmatprep.subr.mxu0 0.0
        %1185 = vmatpush1.msra.mxu0 0.0
        %1186 = vmatprep.subr.mxu0 0.0
        %1187 = vmatpush1.msra.mxu0 0.0
        %1188 = vmatprep.subr.mxu0 0.0
        %1189 = vmatpush1.msra.mxu0 0.0
        %1190 = vmatprep.subr.mxu0 0.0
        %1191 = vmatpush1.msra.mxu0 0.0
        %1192 = vmatprep.subr.mxu0 0.0
        %1193 = vmatpush1.msra.mxu0 0.0
        %1194 = vmatprep.mubr.f32.mxu0 0.0
        %1195 = vmatmul.mubr.f32.gmra.mrb[0].mxu0 %v975
        %v1196 = vpop.f32.mrb[0].mxu0
        %v1197 = vadd.f32 0.0, %v1196
        %v1198 = vpop.f32.mrb[0].mxu0
        %1199 = vmatprep.mubr.f32.mxu0 0.0
        %1200 = vmatmul.mubr.f32.gmra.mrb[0].mxu0 %v978
        %v1201 = vpop.f32.mrb[0].mxu0
        %v1202 = vadd.f32 0.0, %v1201
        %v1203 = vpop.f32.mrb[0].mxu0
        %1204 = vdwg.mxu0
        %1205 = vmatprep.subr.mxu0 0.0
        %1206 = vmatpush1.msra.mxu0 %v424
        %1207 = vmatprep.subr.mxu0 0.0
        %1208 = vmatpush1.msra.mxu0 %v429
        %1209 = vmatprep.subr.mxu0 0.0
        %1210 = vmatpush1.msra.mxu0 0.0
        %1211 = vmatprep.subr.mxu0 0.0
        %1212 = vmatpush1.msra.mxu0 0.0
        %1213 = vmatprep.subr.mxu0 0.0
        %1214 = vmatpush1.msra.mxu0 0.0
        %1215 = vmatprep.subr.mxu0 0.0
        %1216 = vmatpush1.msra.mxu0 0.0
        %1217 = vmatprep.subr.mxu0 0.0
        %1218 = vmatpush1.msra.mxu0 0.0
        %1219 = vmatprep.subr.mxu0 0.0
        %1220 = vmatpush1.msra.mxu0 0.0
        %1221 = vmatprep.subr.mxu0 0.0
        %1222 = vmatpush1.msra.mxu0 0.0
        %1223 = vmatprep.subr.mxu0 0.0
        %1224 = vmatpush1.msra.mxu0 0.0
        %1225 = vmatprep.subr.mxu0 0.0
        %1226 = vmatpush1.msra.mxu0 0.0
        %1227 = vmatprep.subr.mxu0 0.0
        %1228 = vmatpush1.msra.mxu0 0.0
        %1229 = vmatprep.subr.mxu0 0.0
        %1230 = vmatpush1.msra.mxu0 0.0
        %1231 = vmatprep.subr.mxu0 0.0
        %1232 = vmatpush1.msra.mxu0 0.0
        %1233 = vmatprep.subr.mxu0 0.0
        %1234 = vmatpush1.msra.mxu0 0.0
        %1235 = vmatprep.subr.mxu0 0.0
        %1236 = vmatpush1.msra.mxu0 0.0
        %1237 = vmatprep.subr.mxu0 0.0
        %1238 = vmatpush1.msra.mxu0 0.0
        %1239 = vmatprep.subr.mxu0 0.0
        %1240 = vmatpush1.msra.mxu0 0.0
        %1241 = vmatprep.subr.mxu0 0.0
        %1242 = vmatpush1.msra.mxu0 0.0
        %1243 = vmatprep.subr.mxu0 0.0
        %1244 = vmatpush1.msra.mxu0 0.0
        %1245 = vmatprep.subr.mxu0 0.0
        %1246 = vmatpush1.msra.mxu0 0.0
        %1247 = vmatprep.subr.mxu0 0.0
        %1248 = vmatpush1.msra.mxu0 0.0
        %1249 = vmatprep.subr.mxu0 0.0
        %1250 = vmatpush1.msra.mxu0 0.0
        %1251 = vmatprep.subr.mxu0 0.0
        %1252 = vmatpush1.msra.mxu0 0.0
        %1253 = vmatprep.subr.mxu0 0.0
        %1254 = vmatpush1.msra.mxu0 0.0
        %1255 = vmatprep.subr.mxu0 0.0
        %1256 = vmatpush1.msra.mxu0 0.0
        %1257 = vmatprep.subr.mxu0 0.0
        %1258 = vmatpush1.msra.mxu0 0.0
        %1259 = vmatprep.subr.mxu0 0.0
        %1260 = vmatpush1.msra.mxu0 0.0
        %1261 = vmatprep.subr.mxu0 0.0
        %1262 = vmatpush1.msra.mxu0 0.0
        %1263 = vmatprep.subr.mxu0 0.0
        %1264 = vmatpush1.msra.mxu0 0.0
        %1265 = vmatprep.subr.mxu0 0.0
        %1266 = vmatpush1.msra.mxu0 0.0
        %1267 = vmatprep.subr.mxu0 0.0
        %1268 = vmatpush1.msra.mxu0 0.0
        %1269 = vmatprep.mubr.f32.mxu0 0.0
        %1270 = vmatmul.mubr.f32.gmra.mrb[0].mxu0 %v975
        %v1271 = vpop.f32.mrb[0].mxu0
        %v1272 = vadd.f32 0.0, %v1271
        %v1273 = vpop.f32.mrb[0].mxu0
        %1274 = vmatprep.mubr.f32.mxu0 0.0
        %1275 = vmatmul.mubr.f32.gmra.mrb[0].mxu0 %v978
        %v1276 = vpop.f32.mrb[0].mxu0
        %v1277 = vadd.f32 0.0, %v1276
        %v1278 = vpop.f32.mrb[0].mxu0
        %1279 = vdwg.mxu0
        %1280 = vmatprep.subr.mxu0 0.0
        %1281 = vmatpush1.msra.mxu0 %v523
        %1282 = vmatprep.subr.mxu0 0.0
        %1283 = vmatpush1.msra.mxu0 %v528
        %1284 = vmatprep.subr.mxu0 0.0
        %1285 = vmatpush1.msra.mxu0 0.0
        %1286 = vmatprep.subr.mxu0 0.0
        %1287 = vmatpush1.msra.mxu0 0.0
        %1288 = vmatprep.subr.mxu0 0.0
        %1289 = vmatpush1.msra.mxu0 0.0
        %1290 = vmatprep.subr.mxu0 0.0
        %1291 = vmatpush1.msra.mxu0 0.0
        %1292 = vmatprep.subr.mxu0 0.0
        %1293 = vmatpush1.msra.mxu0 0.0
        %1294 = vmatprep.subr.mxu0 0.0
        %1295 = vmatpush1.msra.mxu0 0.0
        %1296 = vmatprep.subr.mxu0 0.0
        %1297 = vmatpush1.msra.mxu0 0.0
        %1298 = vmatprep.subr.mxu0 0.0
        %1299 = vmatpush1.msra.mxu0 0.0
        %1300 = vmatprep.subr.mxu0 0.0
        %1301 = vmatpush1.msra.mxu0 0.0
        %1302 = vmatprep.subr.mxu0 0.0
        %1303 = vmatpush1.msra.mxu0 0.0
        %1304 = vmatprep.subr.mxu0 0.0
        %1305 = vmatpush1.msra.mxu0 0.0
        %1306 = vmatprep.subr.mxu0 0.0
        %1307 = vmatpush1.msra.mxu0 0.0
        %1308 = vmatprep.subr.mxu0 0.0
        %1309 = vmatpush1.msra.mxu0 0.0
        %1310 = vmatprep.subr.mxu0 0.0
        %1311 = vmatpush1.msra.mxu0 0.0
        %1312 = vmatprep.subr.mxu0 0.0
        %1313 = vmatpush1.msra.mxu0 0.0
        %1314 = vmatprep.subr.mxu0 0.0
        %1315 = vmatpush1.msra.mxu0 0.0
        %1316 = vmatprep.subr.mxu0 0.0
        %1317 = vmatpush1.msra.mxu0 0.0
        %1318 = vmatprep.subr.mxu0 0.0
        %1319 = vmatpush1.msra.mxu0 0.0
        %1320 = vmatprep.subr.mxu0 0.0
        %1321 = vmatpush1.msra.mxu0 0.0
        %1322 = vmatprep.subr.mxu0 0.0
        %1323 = vmatpush1.msra.mxu0 0.0
        %1324 = vmatprep.subr.mxu0 0.0
        %1325 = vmatpush1.msra.mxu0 0.0
        %1326 = vmatprep.subr.mxu0 0.0
        %1327 = vmatpush1.msra.mxu0 0.0
        %1328 = vmatprep.subr.mxu0 0.0
        %1329 = vmatpush1.msra.mxu0 0.0
        %1330 = vmatprep.subr.mxu0 0.0
        %1331 = vmatpush1.msra.mxu0 0.0
        %1332 = vmatprep.subr.mxu0 0.0
        %1333 = vmatpush1.msra.mxu0 0.0
        %1334 = vmatprep.subr.mxu0 0.0
        %1335 = vmatpush1.msra.mxu0 0.0
        %1336 = vmatprep.subr.mxu0 0.0
        %1337 = vmatpush1.msra.mxu0 0.0
        %1338 = vmatprep.subr.mxu0 0.0
        %1339 = vmatpush1.msra.mxu0 0.0
        %1340 = vmatprep.subr.mxu0 0.0
        %1341 = vmatpush1.msra.mxu0 0.0
        %1342 = vmatprep.subr.mxu0 0.0
        %1343 = vmatpush1.msra.mxu0 0.0
        %1344 = vmatprep.mubr.f32.mxu0 0.0
        %1345 = vmatmul.mubr.f32.gmra.mrb[0].mxu0 %v975
        %v1346 = vpop.f32.mrb[0].mxu0
        %v1347 = vadd.f32 0.0, %v1346
        %v1348 = vpop.f32.mrb[0].mxu0
        %1349 = vmatprep.mubr.f32.mxu0 0.0
        %1350 = vmatmul.mubr.f32.gmra.mrb[0].mxu0 %v978
        %v1351 = vpop.f32.mrb[0].mxu0
        %v1352 = vadd.f32 0.0, %v1351
        %v1353 = vpop.f32.mrb[0].mxu0
        %1354 = vdwg.mxu0
        %1355 = vmatprep.subr.mxu0 0.0
        %1356 = vmatpush1.msra.mxu0 %v533
        %1357 = vmatprep.subr.mxu0 0.0
        %1358 = vmatpush1.msra.mxu0 %v538
        %1359 = vmatprep.subr.mxu0 0.0
        %1360 = vmatpush1.msra.mxu0 0.0
        %1361 = vmatprep.subr.mxu0 0.0
        %1362 = vmatpush1.msra.mxu0 0.0
        %1363 = vmatprep.subr.mxu0 0.0
        %1364 = vmatpush1.msra.mxu0 0.0
        %1365 = vmatprep.subr.mxu0 0.0
        %1366 = vmatpush1.msra.mxu0 0.0
        %1367 = vmatprep.subr.mxu0 0.0
        %1368 = vmatpush1.msra.mxu0 0.0
        %1369 = vmatprep.subr.mxu0 0.0
        %1370 = vmatpush1.msra.mxu0 0.0
        %1371 = vmatprep.subr.mxu0 0.0
        %1372 = vmatpush1.msra.mxu0 0.0
        %1373 = vmatprep.subr.mxu0 0.0
        %1374 = vmatpush1.msra.mxu0 0.0
        %1375 = vmatprep.subr.mxu0 0.0
        %1376 = vmatpush1.msra.mxu0 0.0
        %1377 = vmatprep.subr.mxu0 0.0
        %1378 = vmatpush1.msra.mxu0 0.0
        %1379 = vmatprep.subr.mxu0 0.0
        %1380 = vmatpush1.msra.mxu0 0.0
        %1381 = vmatprep.subr.mxu0 0.0
        %1382 = vmatpush1.msra.mxu0 0.0
        %1383 = vmatprep.subr.mxu0 0.0
        %1384 = vmatpush1.msra.mxu0 0.0
        %1385 = vmatprep.subr.mxu0 0.0
        %1386 = vmatpush1.msra.mxu0 0.0
        %1387 = vmatprep.subr.mxu0 0.0
        %1388 = vmatpush1.msra.mxu0 0.0
        %1389 = vmatprep.subr.mxu0 0.0
        %1390 = vmatpush1.msra.mxu0 0.0
        %1391 = vmatprep.subr.mxu0 0.0
        %1392 = vmatpush1.msra.mxu0 0.0
        %1393 = vmatprep.subr.mxu0 0.0
        %1394 = vmatpush1.msra.mxu0 0.0
        %1395 = vmatprep.subr.mxu0 0.0
        %1396 = vmatpush1.msra.mxu0 0.0
        %1397 = vmatprep.subr.mxu0 0.0
        %1398 = vmatpush1.msra.mxu0 0.0
        %1399 = vmatprep.subr.mxu0 0.0
        %1400 = vmatpush1.msra.mxu0 0.0
        %1401 = vmatprep.subr.mxu0 0.0
        %1402 = vmatpush1.msra.mxu0 0.0
        %1403 = vmatprep.subr.mxu0 0.0
        %1404 = vmatpush1.msra.mxu0 0.0
        %1405 = vmatprep.subr.mxu0 0.0
        %1406 = vmatpush1.msra.mxu0 0.0
        %1407 = vmatprep.subr.mxu0 0.0
        %1408 = vmatpush1.msra.mxu0 0.0
        %1409 = vmatprep.subr.mxu0 0.0
        %1410 = vmatpush1.msra.mxu0 0.0
        %1411 = vmatprep.subr.mxu0 0.0
        %1412 = vmatpush1.msra.mxu0 0.0
        %1413 = vmatprep.subr.mxu0 0.0
        %1414 = vmatpush1.msra.mxu0 0.0
        %1415 = vmatprep.subr.mxu0 0.0
        %1416 = vmatpush1.msra.mxu0 0.0
        %1417 = vmatprep.subr.mxu0 0.0
        %1418 = vmatpush1.msra.mxu0 0.0
        %1419 = vmatprep.mubr.f32.mxu0 0.0
        %1420 = vmatmul.mubr.f32.gmra.mrb[0].mxu0 %v975
        %v1421 = vpop.f32.mrb[0].mxu0
        %v1422 = vadd.f32 0.0, %v1421
        %v1423 = vpop.f32.mrb[0].mxu0
        %1424 = vmatprep.mubr.f32.mxu0 0.0
        %1425 = vmatmul.mubr.f32.gmra.mrb[0].mxu0 %v978
        %v1426 = vpop.f32.mrb[0].mxu0
        %v1427 = vadd.f32 0.0, %v1426
        %v1428 = vpop.f32.mrb[0].mxu0
        %1429 = vdwg.mxu0
        %1430 = vmatprep.subr.mxu0 0.0
        %1431 = vmatpush1.msra.mxu0 %v543
        %1432 = vmatprep.subr.mxu0 0.0
        %1433 = vmatpush1.msra.mxu0 %v548
        %1434 = vmatprep.subr.mxu0 0.0
        %1435 = vmatpush1.msra.mxu0 0.0
        %1436 = vmatprep.subr.mxu0 0.0
        %1437 = vmatpush1.msra.mxu0 0.0
        %1438 = vmatprep.subr.mxu0 0.0
        %1439 = vmatpush1.msra.mxu0 0.0
        %1440 = vmatprep.subr.mxu0 0.0
        %1441 = vmatpush1.msra.mxu0 0.0
        %1442 = vmatprep.subr.mxu0 0.0
        %1443 = vmatpush1.msra.mxu0 0.0
        %1444 = vmatprep.subr.mxu0 0.0
        %1445 = vmatpush1.msra.mxu0 0.0
        %1446 = vmatprep.subr.mxu0 0.0
        %1447 = vmatpush1.msra.mxu0 0.0
        %1448 = vmatprep.subr.mxu0 0.0
        %1449 = vmatpush1.msra.mxu0 0.0
        %1450 = vmatprep.subr.mxu0 0.0
        %1451 = vmatpush1.msra.mxu0 0.0
        %1452 = vmatprep.subr.mxu0 0.0
        %1453 = vmatpush1.msra.mxu0 0.0
        %1454 = vmatprep.subr.mxu0 0.0
        %1455 = vmatpush1.msra.mxu0 0.0
        %1456 = vmatprep.subr.mxu0 0.0
        %1457 = vmatpush1.msra.mxu0 0.0
        %1458 = vmatprep.subr.mxu0 0.0
        %1459 = vmatpush1.msra.mxu0 0.0
        %1460 = vmatprep.subr.mxu0 0.0
        %1461 = vmatpush1.msra.mxu0 0.0
        %1462 = vmatprep.subr.mxu0 0.0
        %1463 = vmatpush1.msra.mxu0 0.0
        %1464 = vmatprep.subr.mxu0 0.0
        %1465 = vmatpush1.msra.mxu0 0.0
        %1466 = vmatprep.subr.mxu0 0.0
        %1467 = vmatpush1.msra.mxu0 0.0
        %1468 = vmatprep.subr.mxu0 0.0
        %1469 = vmatpush1.msra.mxu0 0.0
        %1470 = vmatprep.subr.mxu0 0.0
        %1471 = vmatpush1.msra.mxu0 0.0
        %1472 = vmatprep.subr.mxu0 0.0
        %1473 = vmatpush1.msra.mxu0 0.0
        %1474 = vmatprep.subr.mxu0 0.0
        %1475 = vmatpush1.msra.mxu0 0.0
        %1476 = vmatprep.subr.mxu0 0.0
        %1477 = vmatpush1.msra.mxu0 0.0
        %1478 = vmatprep.subr.mxu0 0.0
        %1479 = vmatpush1.msra.mxu0 0.0
        %1480 = vmatprep.subr.mxu0 0.0
        %1481 = vmatpush1.msra.mxu0 0.0
        %1482 = vmatprep.subr.mxu0 0.0
        %1483 = vmatpush1.msra.mxu0 0.0
        %1484 = vmatprep.subr.mxu0 0.0
        %1485 = vmatpush1.msra.mxu0 0.0
        %1486 = vmatprep.subr.mxu0 0.0
        %1487 = vmatpush1.msra.mxu0 0.0
        %1488 = vmatprep.subr.mxu0 0.0
        %1489 = vmatpush1.msra.mxu0 0.0
        %1490 = vmatprep.subr.mxu0 0.0
        %1491 = vmatpush1.msra.mxu0 0.0
        %1492 = vmatprep.subr.mxu0 0.0
        %1493 = vmatpush1.msra.mxu0 0.0
        %1494 = vmatprep.mubr.f32.mxu0 0.0
        %1495 = vmatmul.mubr.f32.gmra.mrb[0].mxu0 %v975
        %v1496 = vpop.f32.mrb[0].mxu0
        %v1497 = vadd.f32 0.0, %v1496
        %v1498 = vpop.f32.mrb[0].mxu0
        %1499 = vmatprep.mubr.f32.mxu0 0.0
        %1500 = vmatmul.mubr.f32.gmra.mrb[0].mxu0 %v978
        %v1501 = vpop.f32.mrb[0].mxu0
        %v1502 = vadd.f32 0.0, %v1501
        %v1503 = vpop.f32.mrb[0].mxu0
        %1504 = vdwg.mxu0
        %1505 = vmatprep.subr.mxu0 0.0
        %1506 = vmatpush1.msra.mxu0 %v553
        %1507 = vmatprep.subr.mxu0 0.0
        %1508 = vmatpush1.msra.mxu0 %v558
        %1509 = vmatprep.subr.mxu0 0.0
        %1510 = vmatpush1.msra.mxu0 0.0
        %1511 = vmatprep.subr.mxu0 0.0
        %1512 = vmatpush1.msra.mxu0 0.0
        %1513 = vmatprep.subr.mxu0 0.0
        %1514 = vmatpush1.msra.mxu0 0.0
        %1515 = vmatprep.subr.mxu0 0.0
        %1516 = vmatpush1.msra.mxu0 0.0
        %1517 = vmatprep.subr.mxu0 0.0
        %1518 = vmatpush1.msra.mxu0 0.0
        %1519 = vmatprep.subr.mxu0 0.0
        %1520 = vmatpush1.msra.mxu0 0.0
        %1521 = vmatprep.subr.mxu0 0.0
        %1522 = vmatpush1.msra.mxu0 0.0
        %1523 = vmatprep.subr.mxu0 0.0
        %1524 = vmatpush1.msra.mxu0 0.0
        %1525 = vmatprep.subr.mxu0 0.0
        %1526 = vmatpush1.msra.mxu0 0.0
        %1527 = vmatprep.subr.mxu0 0.0
        %1528 = vmatpush1.msra.mxu0 0.0
        %1529 = vmatprep.subr.mxu0 0.0
        %1530 = vmatpush1.msra.mxu0 0.0
        %1531 = vmatprep.subr.mxu0 0.0
        %1532 = vmatpush1.msra.mxu0 0.0
        %1533 = vmatprep.subr.mxu0 0.0
        %1534 = vmatpush1.msra.mxu0 0.0
        %1535 = vmatprep.subr.mxu0 0.0
        %1536 = vmatpush1.msra.mxu0 0.0
        %1537 = vmatprep.subr.mxu0 0.0
        %1538 = vmatpush1.msra.mxu0 0.0
        %1539 = vmatprep.subr.mxu0 0.0
        %1540 = vmatpush1.msra.mxu0 0.0
        %1541 = vmatprep.subr.mxu0 0.0
        %1542 = vmatpush1.msra.mxu0 0.0
        %1543 = vmatprep.subr.mxu0 0.0
        %1544 = vmatpush1.msra.mxu0 0.0
        %1545 = vmatprep.subr.mxu0 0.0
        %1546 = vmatpush1.msra.mxu0 0.0
        %1547 = vmatprep.subr.mxu0 0.0
        %1548 = vmatpush1.msra.mxu0 0.0
        %1549 = vmatprep.subr.mxu0 0.0
        %1550 = vmatpush1.msra.mxu0 0.0
        %1551 = vmatprep.subr.mxu0 0.0
        %1552 = vmatpush1.msra.mxu0 0.0
        %1553 = vmatprep.subr.mxu0 0.0
        %1554 = vmatpush1.msra.mxu0 0.0
        %1555 = vmatprep.subr.mxu0 0.0
        %1556 = vmatpush1.msra.mxu0 0.0
        %1557 = vmatprep.subr.mxu0 0.0
        %1558 = vmatpush1.msra.mxu0 0.0
        %1559 = vmatprep.subr.mxu0 0.0
        %1560 = vmatpush1.msra.mxu0 0.0
        %1561 = vmatprep.subr.mxu0 0.0
        %1562 = vmatpush1.msra.mxu0 0.0
        %1563 = vmatprep.subr.mxu0 0.0
        %1564 = vmatpush1.msra.mxu0 0.0
        %1565 = vmatprep.subr.mxu0 0.0
        %1566 = vmatpush1.msra.mxu0 0.0
        %1567 = vmatprep.subr.mxu0 0.0
        %1568 = vmatpush1.msra.mxu0 0.0
        %1569 = vmatprep.mubr.f32.mxu0 0.0
        %1570 = vmatmul.mubr.f32.gmra.mrb[0].mxu0 %v975
        %v1571 = vpop.f32.mrb[0].mxu0
        %v1572 = vadd.f32 0.0, %v1571
        %v1573 = vpop.f32.mrb[0].mxu0
        %1574 = vmatprep.mubr.f32.mxu0 0.0
        %1575 = vmatmul.mubr.f32.gmra.mrb[0].mxu0 %v978
        %v1576 = vpop.f32.mrb[0].mxu0
        %v1577 = vadd.f32 0.0, %v1576
        %v1578 = vpop.f32.mrb[0].mxu0
        %1579 = vdwg.mxu0
        %1580 = vmatprep.subr.mxu0 0.0
        %1581 = vmatpush1.msra.mxu0 %v797
        %1582 = vmatprep.subr.mxu0 0.0
        %1583 = vmatpush1.msra.mxu0 %v802
        %1584 = vmatprep.subr.mxu0 0.0
        %1585 = vmatpush1.msra.mxu0 0.0
        %1586 = vmatprep.subr.mxu0 0.0
        %1587 = vmatpush1.msra.mxu0 0.0
        %1588 = vmatprep.subr.mxu0 0.0
        %1589 = vmatpush1.msra.mxu0 0.0
        %1590 = vmatprep.subr.mxu0 0.0
        %1591 = vmatpush1.msra.mxu0 0.0
        %1592 = vmatprep.subr.mxu0 0.0
        %1593 = vmatpush1.msra.mxu0 0.0
        %1594 = vmatprep.subr.mxu0 0.0
        %1595 = vmatpush1.msra.mxu0 0.0
        %1596 = vmatprep.subr.mxu0 0.0
        %1597 = vmatpush1.msra.mxu0 0.0
        %1598 = vmatprep.subr.mxu0 0.0
        %1599 = vmatpush1.msra.mxu0 0.0
        %1600 = vmatprep.subr.mxu0 0.0
        %1601 = vmatpush1.msra.mxu0 0.0
        %1602 = vmatprep.subr.mxu0 0.0
        %1603 = vmatpush1.msra.mxu0 0.0
        %1604 = vmatprep.subr.mxu0 0.0
        %1605 = vmatpush1.msra.mxu0 0.0
        %1606 = vmatprep.subr.mxu0 0.0
        %1607 = vmatpush1.msra.mxu0 0.0
        %1608 = vmatprep.subr.mxu0 0.0
        %1609 = vmatpush1.msra.mxu0 0.0
        %1610 = vmatprep.subr.mxu0 0.0
        %1611 = vmatpush1.msra.mxu0 0.0
        %1612 = vmatprep.subr.mxu0 0.0
        %1613 = vmatpush1.msra.mxu0 0.0
        %1614 = vmatprep.subr.mxu0 0.0
        %1615 = vmatpush1.msra.mxu0 0.0
        %1616 = vmatprep.subr.mxu0 0.0
        %1617 = vmatpush1.msra.mxu0 0.0
        %1618 = vmatprep.subr.mxu0 0.0
        %1619 = vmatpush1.msra.mxu0 0.0
        %1620 = vmatprep.subr.mxu0 0.0
        %1621 = vmatpush1.msra.mxu0 0.0
        %1622 = vmatprep.subr.mxu0 0.0
        %1623 = vmatpush1.msra.mxu0 0.0
        %1624 = vmatprep.subr.mxu0 0.0
        %1625 = vmatpush1.msra.mxu0 0.0
        %1626 = vmatprep.subr.mxu0 0.0
        %1627 = vmatpush1.msra.mxu0 0.0
        %1628 = vmatprep.subr.mxu0 0.0
        %1629 = vmatpush1.msra.mxu0 0.0
        %1630 = vmatprep.subr.mxu0 0.0
        %1631 = vmatpush1.msra.mxu0 0.0
        %1632 = vmatprep.subr.mxu0 0.0
        %1633 = vmatpush1.msra.mxu0 0.0
        %1634 = vmatprep.subr.mxu0 0.0
        %1635 = vmatpush1.msra.mxu0 0.0
        %1636 = vmatprep.subr.mxu0 0.0
        %1637 = vmatpush1.msra.mxu0 0.0
        %1638 = vmatprep.subr.mxu0 0.0
        %1639 = vmatpush1.msra.mxu0 0.0
        %1640 = vmatprep.subr.mxu0 0.0
        %1641 = vmatpush1.msra.mxu0 0.0
        %1642 = vmatprep.subr.mxu0 0.0
        %1643 = vmatpush1.msra.mxu0 0.0
        %1644 = vmatprep.mubr.f32.mxu0 0.0
        %1645 = vmatmul.mubr.f32.gmra.mrb[0].mxu0 %v975
        %v1646 = vpop.f32.mrb[0].mxu0
        %v1647 = vadd.f32 0.0, %v1646
        %v1648 = vpop.f32.mrb[0].mxu0
        %1649 = vmatprep.mubr.f32.mxu0 0.0
        %1650 = vmatmul.mubr.f32.gmra.mrb[0].mxu0 %v978
        %v1651 = vpop.f32.mrb[0].mxu0
        %v1652 = vadd.f32 0.0, %v1651
        %v1653 = vpop.f32.mrb[0].mxu0
        %1654 = vdwg.mxu0
        %1655 = vmatprep.subr.mxu0 0.0
        %1656 = vmatpush1.msra.mxu0 %v807
        %1657 = vmatprep.subr.mxu0 0.0
        %1658 = vmatpush1.msra.mxu0 %v812
        %1659 = vmatprep.subr.mxu0 0.0
        %1660 = vmatpush1.msra.mxu0 0.0
        %1661 = vmatprep.subr.mxu0 0.0
        %1662 = vmatpush1.msra.mxu0 0.0
        %1663 = vmatprep.subr.mxu0 0.0
        %1664 = vmatpush1.msra.mxu0 0.0
        %1665 = vmatprep.subr.mxu0 0.0
        %1666 = vmatpush1.msra.mxu0 0.0
        %1667 = vmatprep.subr.mxu0 0.0
        %1668 = vmatpush1.msra.mxu0 0.0
        %1669 = vmatprep.subr.mxu0 0.0
        %1670 = vmatpush1.msra.mxu0 0.0
        %1671 = vmatprep.subr.mxu0 0.0
        %1672 = vmatpush1.msra.mxu0 0.0
        %1673 = vmatprep.subr.mxu0 0.0
        %1674 = vmatpush1.msra.mxu0 0.0
        %1675 = vmatprep.subr.mxu0 0.0
        %1676 = vmatpush1.msra.mxu0 0.0
        %1677 = vmatprep.subr.mxu0 0.0
        %1678 = vmatpush1.msra.mxu0 0.0
        %1679 = vmatprep.subr.mxu0 0.0
        %1680 = vmatpush1.msra.mxu0 0.0
        %1681 = vmatprep.subr.mxu0 0.0
        %1682 = vmatpush1.msra.mxu0 0.0
        %1683 = vmatprep.subr.mxu0 0.0
        %1684 = vmatpush1.msra.mxu0 0.0
        %1685 = vmatprep.subr.mxu0 0.0
        %1686 = vmatpush1.msra.mxu0 0.0
        %1687 = vmatprep.subr.mxu0 0.0
        %1688 = vmatpush1.msra.mxu0 0.0
        %1689 = vmatprep.subr.mxu0 0.0
        %1690 = vmatpush1.msra.mxu0 0.0
        %1691 = vmatprep.subr.mxu0 0.0
        %1692 = vmatpush1.msra.mxu0 0.0
        %1693 = vmatprep.subr.mxu0 0.0
        %1694 = vmatpush1.msra.mxu0 0.0
        %1695 = vmatprep.subr.mxu0 0.0
        %1696 = vmatpush1.msra.mxu0 0.0
        %1697 = vmatprep.subr.mxu0 0.0
        %1698 = vmatpush1.msra.mxu0 0.0
        %1699 = vmatprep.subr.mxu0 0.0
        %1700 = vmatpush1.msra.mxu0 0.0
        %1701 = vmatprep.subr.mxu0 0.0
        %1702 = vmatpush1.msra.mxu0 0.0
        %1703 = vmatprep.subr.mxu0 0.0
        %1704 = vmatpush1.msra.mxu0 0.0
        %1705 = vmatprep.subr.mxu0 0.0
        %1706 = vmatpush1.msra.mxu0 0.0
        %1707 = vmatprep.subr.mxu0 0.0
        %1708 = vmatpush1.msra.mxu0 0.0
        %1709 = vmatprep.subr.mxu0 0.0
        %1710 = vmatpush1.msra.mxu0 0.0
        %1711 = vmatprep.subr.mxu0 0.0
        %1712 = vmatpush1.msra.mxu0 0.0
        %1713 = vmatprep.subr.mxu0 0.0
        %1714 = vmatpush1.msra.mxu0 0.0
        %1715 = vmatprep.subr.mxu0 0.0
        %1716 = vmatpush1.msra.mxu0 0.0
        %1717 = vmatprep.subr.mxu0 0.0
        %1718 = vmatpush1.msra.mxu0 0.0
        %1719 = vmatprep.mubr.f32.mxu0 0.0
        %1720 = vmatmul.mubr.f32.gmra.mrb[0].mxu0 %v975
        %v1721 = vpop.f32.mrb[0].mxu0
        %v1722 = vadd.f32 0.0, %v1721
        %v1723 = vpop.f32.mrb[0].mxu0
        %1724 = vmatprep.mubr.f32.mxu0 0.0
        %1725 = vmatmul.mubr.f32.gmra.mrb[0].mxu0 %v978
        %v1726 = vpop.f32.mrb[0].mxu0
        %v1727 = vadd.f32 0.0, %v1726
        %v1728 = vpop.f32.mrb[0].mxu0
        %1729 = vdwg.mxu0
        %1730 = vmatprep.subr.mxu0 0.0
        %1731 = vmatpush1.msra.mxu0 %v817
        %1732 = vmatprep.subr.mxu0 0.0
        %1733 = vmatpush1.msra.mxu0 %v822
        %1734 = vmatprep.subr.mxu0 0.0
        %1735 = vmatpush1.msra.mxu0 0.0
        %1736 = vmatprep.subr.mxu0 0.0
        %1737 = vmatpush1.msra.mxu0 0.0
        %1738 = vmatprep.subr.mxu0 0.0
        %1739 = vmatpush1.msra.mxu0 0.0
        %1740 = vmatprep.subr.mxu0 0.0
        %1741 = vmatpush1.msra.mxu0 0.0
        %1742 = vmatprep.subr.mxu0 0.0
        %1743 = vmatpush1.msra.mxu0 0.0
        %1744 = vmatprep.subr.mxu0 0.0
        %1745 = vmatpush1.msra.mxu0 0.0
        %1746 = vmatprep.subr.mxu0 0.0
        %1747 = vmatpush1.msra.mxu0 0.0
        %1748 = vmatprep.subr.mxu0 0.0
        %1749 = vmatpush1.msra.mxu0 0.0
        %1750 = vmatprep.subr.mxu0 0.0
        %1751 = vmatpush1.msra.mxu0 0.0
        %1752 = vmatprep.subr.mxu0 0.0
        %1753 = vmatpush1.msra.mxu0 0.0
        %1754 = vmatprep.subr.mxu0 0.0
        %1755 = vmatpush1.msra.mxu0 0.0
        %1756 = vmatprep.subr.mxu0 0.0
        %1757 = vmatpush1.msra.mxu0 0.0
        %1758 = vmatprep.subr.mxu0 0.0
        %1759 = vmatpush1.msra.mxu0 0.0
        %1760 = vmatprep.subr.mxu0 0.0
        %1761 = vmatpush1.msra.mxu0 0.0
        %1762 = vmatprep.subr.mxu0 0.0
        %1763 = vmatpush1.msra.mxu0 0.0
        %1764 = vmatprep.subr.mxu0 0.0
        %1765 = vmatpush1.msra.mxu0 0.0
        %1766 = vmatprep.subr.mxu0 0.0
        %1767 = vmatpush1.msra.mxu0 0.0
        %1768 = vmatprep.subr.mxu0 0.0
        %1769 = vmatpush1.msra.mxu0 0.0
        %1770 = vmatprep.subr.mxu0 0.0
        %1771 = vmatpush1.msra.mxu0 0.0
        %1772 = vmatprep.subr.mxu0 0.0
        %1773 = vmatpush1.msra.mxu0 0.0
        %1774 = vmatprep.subr.mxu0 0.0
        %1775 = vmatpush1.msra.mxu0 0.0
        %1776 = vmatprep.subr.mxu0 0.0
        %1777 = vmatpush1.msra.mxu0 0.0
        %1778 = vmatprep.subr.mxu0 0.0
        %1779 = vmatpush1.msra.mxu0 0.0
        %1780 = vmatprep.subr.mxu0 0.0
        %1781 = vmatpush1.msra.mxu0 0.0
        %1782 = vmatprep.subr.mxu0 0.0
        %1783 = vmatpush1.msra.mxu0 0.0
        %1784 = vmatprep.subr.mxu0 0.0
        %1785 = vmatpush1.msra.mxu0 0.0
        %1786 = vmatprep.subr.mxu0 0.0
        %1787 = vmatpush1.msra.mxu0 0.0
        %1788 = vmatprep.subr.mxu0 0.0
        %1789 = vmatpush1.msra.mxu0 0.0
        %1790 = vmatprep.subr.mxu0 0.0
        %1791 = vmatpush1.msra.mxu0 0.0
        %1792 = vmatprep.subr.mxu0 0.0
        %1793 = vmatpush1.msra.mxu0 0.0
        %1794 = vmatprep.mubr.f32.mxu0 0.0
        %1795 = vmatmul.mubr.f32.gmra.mrb[0].mxu0 %v975
        %v1796 = vpop.f32.mrb[0].mxu0
        %v1797 = vadd.f32 0.0, %v1796
        %v1798 = vpop.f32.mrb[0].mxu0
        %1799 = vmatprep.mubr.f32.mxu0 0.0
        %1800 = vmatmul.mubr.f32.gmra.mrb[0].mxu0 %v978
        %v1801 = vpop.f32.mrb[0].mxu0
        %v1802 = vadd.f32 0.0, %v1801
        %v1803 = vpop.f32.mrb[0].mxu0
        %1804 = vdwg.mxu0
        %1805 = vmatprep.subr.mxu0 0.0
        %1806 = vmatpush1.msra.mxu0 %v827
        %1807 = vmatprep.subr.mxu0 0.0
        %1808 = vmatpush1.msra.mxu0 %v832
        %1809 = vmatprep.subr.mxu0 0.0
        %1810 = vmatpush1.msra.mxu0 0.0
        %1811 = vmatprep.subr.mxu0 0.0
        %1812 = vmatpush1.msra.mxu0 0.0
        %1813 = vmatprep.subr.mxu0 0.0
        %1814 = vmatpush1.msra.mxu0 0.0
        %1815 = vmatprep.subr.mxu0 0.0
        %1816 = vmatpush1.msra.mxu0 0.0
        %1817 = vmatprep.subr.mxu0 0.0
        %1818 = vmatpush1.msra.mxu0 0.0
        %1819 = vmatprep.subr.mxu0 0.0
        %1820 = vmatpush1.msra.mxu0 0.0
        %1821 = vmatprep.subr.mxu0 0.0
        %1822 = vmatpush1.msra.mxu0 0.0
        %1823 = vmatprep.subr.mxu0 0.0
        %1824 = vmatpush1.msra.mxu0 0.0
        %1825 = vmatprep.subr.mxu0 0.0
        %1826 = vmatpush1.msra.mxu0 0.0
        %1827 = vmatprep.subr.mxu0 0.0
        %1828 = vmatpush1.msra.mxu0 0.0
        %1829 = vmatprep.subr.mxu0 0.0
        %1830 = vmatpush1.msra.mxu0 0.0
        %1831 = vmatprep.subr.mxu0 0.0
        %1832 = vmatpush1.msra.mxu0 0.0
        %1833 = vmatprep.subr.mxu0 0.0
        %1834 = vmatpush1.msra.mxu0 0.0
        %1835 = vmatprep.subr.mxu0 0.0
        %1836 = vmatpush1.msra.mxu0 0.0
        %1837 = vmatprep.subr.mxu0 0.0
        %1838 = vmatpush1.msra.mxu0 0.0
        %1839 = vmatprep.subr.mxu0 0.0
        %1840 = vmatpush1.msra.mxu0 0.0
        %1841 = vmatprep.subr.mxu0 0.0
        %1842 = vmatpush1.msra.mxu0 0.0
        %1843 = vmatprep.subr.mxu0 0.0
        %1844 = vmatpush1.msra.mxu0 0.0
        %1845 = vmatprep.subr.mxu0 0.0
        %1846 = vmatpush1.msra.mxu0 0.0
        %1847 = vmatprep.subr.mxu0 0.0
        %1848 = vmatpush1.msra.mxu0 0.0
        %1849 = vmatprep.subr.mxu0 0.0
        %1850 = vmatpush1.msra.mxu0 0.0
        %1851 = vmatprep.subr.mxu0 0.0
        %1852 = vmatpush1.msra.mxu0 0.0
        %1853 = vmatprep.subr.mxu0 0.0
        %1854 = vmatpush1.msra.mxu0 0.0
        %1855 = vmatprep.subr.mxu0 0.0
        %1856 = vmatpush1.msra.mxu0 0.0
        %1857 = vmatprep.subr.mxu0 0.0
        %1858 = vmatpush1.msra.mxu0 0.0
        %1859 = vmatprep.subr.mxu0 0.0
        %1860 = vmatpush1.msra.mxu0 0.0
        %1861 = vmatprep.subr.mxu0 0.0
        %1862 = vmatpush1.msra.mxu0 0.0
        %1863 = vmatprep.subr.mxu0 0.0
        %1864 = vmatpush1.msra.mxu0 0.0
        %1865 = vmatprep.subr.mxu0 0.0
        %1866 = vmatpush1.msra.mxu0 0.0
        %1867 = vmatprep.subr.mxu0 0.0
        %1868 = vmatpush1.msra.mxu0 0.0
        %1869 = vmatprep.mubr.f32.mxu0 0.0
        %1870 = vmatmul.mubr.f32.gmra.mrb[0].mxu0 %v975
        %v1871 = vpop.f32.mrb[0].mxu0
        %v1872 = vadd.f32 0.0, %v1871
        %v1873 = vpop.f32.mrb[0].mxu0
        %1874 = vmatprep.mubr.f32.mxu0 0.0
        %1875 = vmatmul.mubr.f32.gmra.mrb[0].mxu0 %v978
        %v1876 = vpop.f32.mrb[0].mxu0
        %v1877 = vadd.f32 0.0, %v1876
        %v1878 = vpop.f32.mrb[0].mxu0
        %1879 = vdwg.mxu0
        %1880 = vmatprep.subr.mxu0 0.0
        %1881 = vmatpush1.msra.mxu0 %v934
        %1882 = vmatprep.subr.mxu0 0.0
        %1883 = vmatpush1.msra.mxu0 %v939
        %1884 = vmatprep.subr.mxu0 0.0
        %1885 = vmatpush1.msra.mxu0 0.0
        %1886 = vmatprep.subr.mxu0 0.0
        %1887 = vmatpush1.msra.mxu0 0.0
        %1888 = vmatprep.subr.mxu0 0.0
        %1889 = vmatpush1.msra.mxu0 0.0
        %1890 = vmatprep.subr.mxu0 0.0
        %1891 = vmatpush1.msra.mxu0 0.0
        %1892 = vmatprep.subr.mxu0 0.0
        %1893 = vmatpush1.msra.mxu0 0.0
        %1894 = vmatprep.subr.mxu0 0.0
        %1895 = vmatpush1.msra.mxu0 0.0
        %1896 = vmatprep.subr.mxu0 0.0
        %1897 = vmatpush1.msra.mxu0 0.0
        %1898 = vmatprep.subr.mxu0 0.0
        %1899 = vmatpush1.msra.mxu0 0.0
        %1900 = vmatprep.subr.mxu0 0.0
        %1901 = vmatpush1.msra.mxu0 0.0
        %1902 = vmatprep.subr.mxu0 0.0
        %1903 = vmatpush1.msra.mxu0 0.0
        %1904 = vmatprep.subr.mxu0 0.0
        %1905 = vmatpush1.msra.mxu0 0.0
        %1906 = vmatprep.subr.mxu0 0.0
        %1907 = vmatpush1.msra.mxu0 0.0
        %1908 = vmatprep.subr.mxu0 0.0
        %1909 = vmatpush1.msra.mxu0 0.0
        %1910 = vmatprep.subr.mxu0 0.0
        %1911 = vmatpush1.msra.mxu0 0.0
        %1912 = vmatprep.subr.mxu0 0.0
        %1913 = vmatpush1.msra.mxu0 0.0
        %1914 = vmatprep.subr.mxu0 0.0
        %1915 = vmatpush1.msra.mxu0 0.0
        %1916 = vmatprep.subr.mxu0 0.0
        %1917 = vmatpush1.msra.mxu0 0.0
        %1918 = vmatprep.subr.mxu0 0.0
        %1919 = vmatpush1.msra.mxu0 0.0
        %1920 = vmatprep.subr.mxu0 0.0
        %1921 = vmatpush1.msra.mxu0 0.0
        %1922 = vmatprep.subr.mxu0 0.0
        %1923 = vmatpush1.msra.mxu0 0.0
        %1924 = vmatprep.subr.mxu0 0.0
        %1925 = vmatpush1.msra.mxu0 0.0
        %1926 = vmatprep.subr.mxu0 0.0
        %1927 = vmatpush1.msra.mxu0 0.0
        %1928 = vmatprep.subr.mxu0 0.0
        %1929 = vmatpush1.msra.mxu0 0.0
        %1930 = vmatprep.subr.mxu0 0.0
        %1931 = vmatpush1.msra.mxu0 0.0
        %1932 = vmatprep.subr.mxu0 0.0
        %1933 = vmatpush1.msra.mxu0 0.0
        %1934 = vmatprep.subr.mxu0 0.0
        %1935 = vmatpush1.msra.mxu0 0.0
        %1936 = vmatprep.subr.mxu0 0.0
        %1937 = vmatpush1.msra.mxu0 0.0
        %1938 = vmatprep.subr.mxu0 0.0
        %1939 = vmatpush1.msra.mxu0 0.0
        %1940 = vmatprep.subr.mxu0 0.0
        %1941 = vmatpush1.msra.mxu0 0.0
        %1942 = vmatprep.subr.mxu0 0.0
        %1943 = vmatpush1.msra.mxu0 0.0
        %1944 = vmatprep.mubr.f32.mxu0 0.0
        %1945 = vmatmul.mubr.f32.gmra.mrb[0].mxu0 %v975
        %v1946 = vpop.f32.mrb[0].mxu0
        %v1947 = vadd.f32 0.0, %v1946
        %v1948 = vpop.f32.mrb[0].mxu0
        %1949 = vmatprep.mubr.f32.mxu0 0.0
        %1950 = vmatmul.mubr.f32.gmra.mrb[0].mxu0 %v978
        %v1951 = vpop.f32.mrb[0].mxu0
        %v1952 = vadd.f32 0.0, %v1951
        %v1953 = vpop.f32.mrb[0].mxu0
        %1954 = vdwg.mxu0
        %1955 = vmatprep.subr.mxu0 0.0
        %1956 = vmatpush1.msra.mxu0 %v944
        %1957 = vmatprep.subr.mxu0 0.0
        %1958 = vmatpush1.msra.mxu0 %v949
        %1959 = vmatprep.subr.mxu0 0.0
        %1960 = vmatpush1.msra.mxu0 0.0
        %1961 = vmatprep.subr.mxu0 0.0
        %1962 = vmatpush1.msra.mxu0 0.0
        %1963 = vmatprep.subr.mxu0 0.0
        %1964 = vmatpush1.msra.mxu0 0.0
        %1965 = vmatprep.subr.mxu0 0.0
        %1966 = vmatpush1.msra.mxu0 0.0
        %1967 = vmatprep.subr.mxu0 0.0
        %1968 = vmatpush1.msra.mxu0 0.0
        %1969 = vmatprep.subr.mxu0 0.0
        %1970 = vmatpush1.msra.mxu0 0.0
        %1971 = vmatprep.subr.mxu0 0.0
        %1972 = vmatpush1.msra.mxu0 0.0
        %1973 = vmatprep.subr.mxu0 0.0
        %1974 = vmatpush1.msra.mxu0 0.0
        %1975 = vmatprep.subr.mxu0 0.0
        %1976 = vmatpush1.msra.mxu0 0.0
        %1977 = vmatprep.subr.mxu0 0.0
        %1978 = vmatpush1.msra.mxu0 0.0
        %1979 = vmatprep.subr.mxu0 0.0
        %1980 = vmatpush1.msra.mxu0 0.0
        %1981 = vmatprep.subr.mxu0 0.0
        %1982 = vmatpush1.msra.mxu0 0.0
        %1983 = vmatprep.subr.mxu0 0.0
        %1984 = vmatpush1.msra.mxu0 0.0
        %1985 = vmatprep.subr.mxu0 0.0
        %1986 = vmatpush1.msra.mxu0 0.0
        %1987 = vmatprep.subr.mxu0 0.0
        %1988 = vmatpush1.msra.mxu0 0.0
        %1989 = vmatprep.subr.mxu0 0.0
        %1990 = vmatpush1.msra.mxu0 0.0
        %1991 = vmatprep.subr.mxu0 0.0
        %1992 = vmatpush1.msra.mxu0 0.0
        %1993 = vmatprep.subr.mxu0 0.0
        %1994 = vmatpush1.msra.mxu0 0.0
        %1995 = vmatprep.subr.mxu0 0.0
        %1996 = vmatpush1.msra.mxu0 0.0
        %1997 = vmatprep.subr.mxu0 0.0
        %1998 = vmatpush1.msra.mxu0 0.0
        %1999 = vmatprep.subr.mxu0 0.0
        %2000 = vmatpush1.msra.mxu0 0.0
        %2001 = vmatprep.subr.mxu0 0.0
        %2002 = vmatpush1.msra.mxu0 0.0
        %2003 = vmatprep.subr.mxu0 0.0
        %2004 = vmatpush1.msra.mxu0 0.0
        %2005 = vmatprep.subr.mxu0 0.0
        %2006 = vmatpush1.msra.mxu0 0.0
        %2007 = vmatprep.subr.mxu0 0.0
        %2008 = vmatpush1.msra.mxu0 0.0
        %2009 = vmatprep.subr.mxu0 0.0
        %2010 = vmatpush1.msra.mxu0 0.0
        %2011 = vmatprep.subr.mxu0 0.0
        %2012 = vmatpush1.msra.mxu0 0.0
        %2013 = vmatprep.subr.mxu0 0.0
        %2014 = vmatpush1.msra.mxu0 0.0
        %2015 = vmatprep.subr.mxu0 0.0
        %2016 = vmatpush1.msra.mxu0 0.0
        %2017 = vmatprep.subr.mxu0 0.0
        %2018 = vmatpush1.msra.mxu0 0.0
        %2019 = vmatprep.mubr.f32.mxu0 0.0
        %2020 = vmatmul.mubr.f32.gmra.mrb[0].mxu0 %v975
        %v2021 = vpop.f32.mrb[0].mxu0
        %v2022 = vadd.f32 0.0, %v2021
        %v2023 = vpop.f32.mrb[0].mxu0
        %2024 = vmatprep.mubr.f32.mxu0 0.0
        %2025 = vmatmul.mubr.f32.gmra.mrb[0].mxu0 %v978
        %v2026 = vpop.f32.mrb[0].mxu0
        %v2027 = vadd.f32 0.0, %v2026
        %v2028 = vpop.f32.mrb[0].mxu0
        %2029 = vdwg.mxu0
        %2030 = vmatprep.subr.mxu0 0.0
        %2031 = vmatpush1.msra.mxu0 %v954
        %2032 = vmatprep.subr.mxu0 0.0
        %2033 = vmatpush1.msra.mxu0 %v959
        %2034 = vmatprep.subr.mxu0 0.0
        %2035 = vmatpush1.msra.mxu0 0.0
        %2036 = vmatprep.subr.mxu0 0.0
        %2037 = vmatpush1.msra.mxu0 0.0
        %2038 = vmatprep.subr.mxu0 0.0
        %2039 = vmatpush1.msra.mxu0 0.0
        %2040 = vmatprep.subr.mxu0 0.0
        %2041 = vmatpush1.msra.mxu0 0.0
        %2042 = vmatprep.subr.mxu0 0.0
        %2043 = vmatpush1.msra.mxu0 0.0
        %2044 = vmatprep.subr.mxu0 0.0
        %2045 = vmatpush1.msra.mxu0 0.0
        %2046 = vmatprep.subr.mxu0 0.0
        %2047 = vmatpush1.msra.mxu0 0.0
        %2048 = vmatprep.subr.mxu0 0.0
        %2049 = vmatpush1.msra.mxu0 0.0
        %2050 = vmatprep.subr.mxu0 0.0
        %2051 = vmatpush1.msra.mxu0 0.0
        %2052 = vmatprep.subr.mxu0 0.0
        %2053 = vmatpush1.msra.mxu0 0.0
        %2054 = vmatprep.subr.mxu0 0.0
        %2055 = vmatpush1.msra.mxu0 0.0
        %2056 = vmatprep.subr.mxu0 0.0
        %2057 = vmatpush1.msra.mxu0 0.0
        %2058 = vmatprep.subr.mxu0 0.0
        %2059 = vmatpush1.msra.mxu0 0.0
        %2060 = vmatprep.subr.mxu0 0.0
        %2061 = vmatpush1.msra.mxu0 0.0
        %2062 = vmatprep.subr.mxu0 0.0
        %2063 = vmatpush1.msra.mxu0 0.0
        %2064 = vmatprep.subr.mxu0 0.0
        %2065 = vmatpush1.msra.mxu0 0.0
        %2066 = vmatprep.subr.mxu0 0.0
        %2067 = vmatpush1.msra.mxu0 0.0
        %2068 = vmatprep.subr.mxu0 0.0
        %2069 = vmatpush1.msra.mxu0 0.0
        %2070 = vmatprep.subr.mxu0 0.0
        %2071 = vmatpush1.msra.mxu0 0.0
        %2072 = vmatprep.subr.mxu0 0.0
        %2073 = vmatpush1.msra.mxu0 0.0
        %2074 = vmatprep.subr.mxu0 0.0
        %2075 = vmatpush1.msra.mxu0 0.0
        %2076 = vmatprep.subr.mxu0 0.0
        %2077 = vmatpush1.msra.mxu0 0.0
        %2078 = vmatprep.subr.mxu0 0.0
        %2079 = vmatpush1.msra.mxu0 0.0
        %2080 = vmatprep.subr.mxu0 0.0
        %2081 = vmatpush1.msra.mxu0 0.0
        %2082 = vmatprep.subr.mxu0 0.0
        %2083 = vmatpush1.msra.mxu0 0.0
        %2084 = vmatprep.subr.mxu0 0.0
        %2085 = vmatpush1.msra.mxu0 0.0
        %2086 = vmatprep.subr.mxu0 0.0
        %2087 = vmatpush1.msra.mxu0 0.0
        %2088 = vmatprep.subr.mxu0 0.0
        %2089 = vmatpush1.msra.mxu0 0.0
        %2090 = vmatprep.subr.mxu0 0.0
        %2091 = vmatpush1.msra.mxu0 0.0
        %2092 = vmatprep.subr.mxu0 0.0
        %2093 = vmatpush1.msra.mxu0 0.0
        %2094 = vmatprep.mubr.f32.mxu0 0.0
        %2095 = vmatmul.mubr.f32.gmra.mrb[0].mxu0 %v975
        %v2096 = vpop.f32.mrb[0].mxu0
        %v2097 = vadd.f32 0.0, %v2096
        %v2098 = vpop.f32.mrb[0].mxu0
        %2099 = vmatprep.mubr.f32.mxu0 0.0
        %2100 = vmatmul.mubr.f32.gmra.mrb[0].mxu0 %v978
        %v2101 = vpop.f32.mrb[0].mxu0
        %v2102 = vadd.f32 0.0, %v2101
        %v2103 = vpop.f32.mrb[0].mxu0
        %2104 = vdwg.mxu0
        %2105 = vmatprep.subr.mxu0 0.0
        %2106 = vmatpush1.msra.mxu0 %v964
        %2107 = vmatprep.subr.mxu0 0.0
        %2108 = vmatpush1.msra.mxu0 %v969
        %2109 = vmatprep.subr.mxu0 0.0
        %2110 = vmatpush1.msra.mxu0 0.0
        %2111 = vmatprep.subr.mxu0 0.0
        %2112 = vmatpush1.msra.mxu0 0.0
        %2113 = vmatprep.subr.mxu0 0.0
        %2114 = vmatpush1.msra.mxu0 0.0
        %2115 = vmatprep.subr.mxu0 0.0
        %2116 = vmatpush1.msra.mxu0 0.0
        %2117 = vmatprep.subr.mxu0 0.0
        %2118 = vmatpush1.msra.mxu0 0.0
        %2119 = vmatprep.subr.mxu0 0.0
        %2120 = vmatpush1.msra.mxu0 0.0
        %2121 = vmatprep.subr.mxu0 0.0
        %2122 = vmatpush1.msra.mxu0 0.0
        %2123 = vmatprep.subr.mxu0 0.0
        %2124 = vmatpush1.msra.mxu0 0.0
        %2125 = vmatprep.subr.mxu0 0.0
        %2126 = vmatpush1.msra.mxu0 0.0
        %2127 = vmatprep.subr.mxu0 0.0
        %2128 = vmatpush1.msra.mxu0 0.0
        %2129 = vmatprep.subr.mxu0 0.0
        %2130 = vmatpush1.msra.mxu0 0.0
        %2131 = vmatprep.subr.mxu0 0.0
        %2132 = vmatpush1.msra.mxu0 0.0
        %2133 = vmatprep.subr.mxu0 0.0
        %2134 = vmatpush1.msra.mxu0 0.0
        %2135 = vmatprep.subr.mxu0 0.0
        %2136 = vmatpush1.msra.mxu0 0.0
        %2137 = vmatprep.subr.mxu0 0.0
        %2138 = vmatpush1.msra.mxu0 0.0
        %2139 = vmatprep.subr.mxu0 0.0
        %2140 = vmatpush1.msra.mxu0 0.0
        %2141 = vmatprep.subr.mxu0 0.0
        %2142 = vmatpush1.msra.mxu0 0.0
        %2143 = vmatprep.subr.mxu0 0.0
        %2144 = vmatpush1.msra.mxu0 0.0
        %2145 = vmatprep.subr.mxu0 0.0
        %2146 = vmatpush1.msra.mxu0 0.0
        %2147 = vmatprep.subr.mxu0 0.0
        %2148 = vmatpush1.msra.mxu0 0.0
        %2149 = vmatprep.subr.mxu0 0.0
        %2150 = vmatpush1.msra.mxu0 0.0
        %2151 = vmatprep.subr.mxu0 0.0
        %2152 = vmatpush1.msra.mxu0 0.0
        %2153 = vmatprep.subr.mxu0 0.0
        %2154 = vmatpush1.msra.mxu0 0.0
        %2155 = vmatprep.subr.mxu0 0.0
        %2156 = vmatpush1.msra.mxu0 0.0
        %2157 = vmatprep.subr.mxu0 0.0
        %2158 = vmatpush1.msra.mxu0 0.0
        %2159 = vmatprep.subr.mxu0 0.0
        %2160 = vmatpush1.msra.mxu0 0.0
        %2161 = vmatprep.subr.mxu0 0.0
        %2162 = vmatpush1.msra.mxu0 0.0
        %2163 = vmatprep.subr.mxu0 0.0
        %2164 = vmatpush1.msra.mxu0 0.0
        %2165 = vmatprep.subr.mxu0 0.0
        %2166 = vmatpush1.msra.mxu0 0.0
        %2167 = vmatprep.subr.mxu0 0.0
        %2168 = vmatpush1.msra.mxu0 0.0
        %2169 = vmatprep.mubr.f32.mxu0 0.0
        %2170 = vmatmul.mubr.f32.gmra.mrb[0].mxu0 %v975
        %v2171 = vpop.f32.mrb[0].mxu0
        %v2172 = vadd.f32 0.0, %v2171
        %v2173 = vpop.f32.mrb[0].mxu0
        %2174 = vmatprep.mubr.f32.mxu0 0.0
        %2175 = vmatmul.mubr.f32.gmra.mrb[0].mxu0 %v978
        %v2176 = vpop.f32.mrb[0].mxu0
        %v2177 = vadd.f32 0.0, %v2176
        %v2178 = vpop.f32.mrb[0].mxu0
        %2179 = vdwg.mxu0
        %v2180 = vmul.f32 %v1047, %v1347
        %v2181 = vmul.f32 %v1052, %v1352
        %v2182 = vmul.f32 %v1122, %v1422
        %v2183 = vmul.f32 %v1127, %v1427
        %v2184 = vmul.f32 %v1197, %v1497
        %v2185 = vmul.f32 %v1202, %v1502
        %v2186 = vmul.f32 %v1272, %v1572
        %v2187 = vmul.f32 %v1277, %v1577
        %v2188 = vmul.f32 %v1047, %v1047
        %v2189 = vmul.f32 %v1052, %v1052
        %v2190 = vmul.f32 %v1122, %v1122
        %v2191 = vmul.f32 %v1127, %v1127
        %v2192 = vmul.f32 %v1197, %v1197
        %v2193 = vmul.f32 %v1202, %v1202
        %v2194 = vmul.f32 %v1272, %v1272
        %v2195 = vmul.f32 %v1277, %v1277
        %v2196 = vmul.f32 %v1347, %v1347
        %v2197 = vmul.f32 %v1352, %v1352
        %v2198 = vmul.f32 %v1422, %v1422
        %v2199 = vmul.f32 %v1427, %v1427
        %v2200 = vmul.f32 %v1497, %v1497
        %v2201 = vmul.f32 %v1502, %v1502
        %v2202 = vmul.f32 %v1572, %v1572
        %v2203 = vmul.f32 %v1577, %v1577
        %v2204 = vadd.f32 %v2188, %v2196
        %v2205 = vadd.f32 %v2189, %v2197
        %v2206 = vadd.f32 %v2190, %v2198
        %v2207 = vadd.f32 %v2191, %v2199
        %v2208 = vadd.f32 %v2192, %v2200
        %v2209 = vadd.f32 %v2193, %v2201
        %v2210 = vadd.f32 %v2194, %v2202
        %v2211 = vadd.f32 %v2195, %v2203
        %2212 = vmatprep.subr.mxu0 0.0
        %2213 = vmatpush1.msra.mxu0 %v660
        %2214 = vmatprep.subr.mxu0 0.0
        %2215 = vmatpush1.msra.mxu0 %v665
        %2216 = vmatprep.subr.mxu0 0.0
        %2217 = vmatpush1.msra.mxu0 0.0
        %2218 = vmatprep.subr.mxu0 0.0
        %2219 = vmatpush1.msra.mxu0 0.0
        %2220 = vmatprep.subr.mxu0 0.0
        %2221 = vmatpush1.msra.mxu0 0.0
        %2222 = vmatprep.subr.mxu0 0.0
        %2223 = vmatpush1.msra.mxu0 0.0
        %2224 = vmatprep.subr.mxu0 0.0
        %2225 = vmatpush1.msra.mxu0 0.0
        %2226 = vmatprep.subr.mxu0 0.0
        %2227 = vmatpush1.msra.mxu0 0.0
        %2228 = vmatprep.subr.mxu0 0.0
        %2229 = vmatpush1.msra.mxu0 0.0
        %2230 = vmatprep.subr.mxu0 0.0
        %2231 = vmatpush1.msra.mxu0 0.0
        %2232 = vmatprep.subr.mxu0 0.0
        %2233 = vmatpush1.msra.mxu0 0.0
        %2234 = vmatprep.subr.mxu0 0.0
        %2235 = vmatpush1.msra.mxu0 0.0
        %2236 = vmatprep.subr.mxu0 0.0
        %2237 = vmatpush1.msra.mxu0 0.0
        %2238 = vmatprep.subr.mxu0 0.0
        %2239 = vmatpush1.msra.mxu0 0.0
        %2240 = vmatprep.subr.mxu0 0.0
        %2241 = vmatpush1.msra.mxu0 0.0
        %2242 = vmatprep.subr.mxu0 0.0
        %2243 = vmatpush1.msra.mxu0 0.0
        %2244 = vmatprep.subr.mxu0 0.0
        %2245 = vmatpush1.msra.mxu0 0.0
        %2246 = vmatprep.subr.mxu0 0.0
        %2247 = vmatpush1.msra.mxu0 0.0
        %2248 = vmatprep.subr.mxu0 0.0
        %2249 = vmatpush1.msra.mxu0 0.0
        %2250 = vmatprep.subr.mxu0 0.0
        %2251 = vmatpush1.msra.mxu0 0.0
        %2252 = vmatprep.subr.mxu0 0.0
        %2253 = vmatpush1.msra.mxu0 0.0
        %2254 = vmatprep.subr.mxu0 0.0
        %2255 = vmatpush1.msra.mxu0 0.0
        %2256 = vmatprep.subr.mxu0 0.0
        %2257 = vmatpush1.msra.mxu0 0.0
        %2258 = vmatprep.subr.mxu0 0.0
        %2259 = vmatpush1.msra.mxu0 0.0
        %2260 = vmatprep.subr.mxu0 0.0
        %2261 = vmatpush1.msra.mxu0 0.0
        %2262 = vmatprep.subr.mxu0 0.0
        %2263 = vmatpush1.msra.mxu0 0.0
        %2264 = vmatprep.subr.mxu0 0.0
        %2265 = vmatpush1.msra.mxu0 0.0
        %2266 = vmatprep.subr.mxu0 0.0
        %2267 = vmatpush1.msra.mxu0 0.0
        %2268 = vmatprep.subr.mxu0 0.0
        %2269 = vmatpush1.msra.mxu0 0.0
        %2270 = vmatprep.subr.mxu0 0.0
        %2271 = vmatpush1.msra.mxu0 0.0
        %2272 = vmatprep.subr.mxu0 0.0
        %2273 = vmatpush1.msra.mxu0 0.0
        %2274 = vmatprep.subr.mxu0 0.0
        %2275 = vmatpush1.msra.mxu0 0.0
        %2276 = vmatprep.mubr.f32.mxu0 0.0
        %2277 = vmatmul.mubr.f32.gmra.mrb[0].mxu0 %v975
        %v2278 = vpop.f32.mrb[0].mxu0
        %v2279 = vadd.f32 %v1647, %v2278
        %v2280 = vpop.f32.mrb[0].mxu0
        %2281 = vmatprep.mubr.f32.mxu0 0.0
        %2282 = vmatmul.mubr.f32.gmra.mrb[0].mxu0 %v978
        %v2283 = vpop.f32.mrb[0].mxu0
        %v2284 = vadd.f32 %v1652, %v2283
        %v2285 = vpop.f32.mrb[0].mxu0
        %2286 = vdwg.mxu0
        %2287 = vmatprep.subr.mxu0 0.0
        %2288 = vmatpush1.msra.mxu0 %v670
        %2289 = vmatprep.subr.mxu0 0.0
        %2290 = vmatpush1.msra.mxu0 %v675
        %2291 = vmatprep.subr.mxu0 0.0
        %2292 = vmatpush1.msra.mxu0 0.0
        %2293 = vmatprep.subr.mxu0 0.0
        %2294 = vmatpush1.msra.mxu0 0.0
        %2295 = vmatprep.subr.mxu0 0.0
        %2296 = vmatpush1.msra.mxu0 0.0
        %2297 = vmatprep.subr.mxu0 0.0
        %2298 = vmatpush1.msra.mxu0 0.0
        %2299 = vmatprep.subr.mxu0 0.0
        %2300 = vmatpush1.msra.mxu0 0.0
        %2301 = vmatprep.subr.mxu0 0.0
        %2302 = vmatpush1.msra.mxu0 0.0
        %2303 = vmatprep.subr.mxu0 0.0
        %2304 = vmatpush1.msra.mxu0 0.0
        %2305 = vmatprep.subr.mxu0 0.0
        %2306 = vmatpush1.msra.mxu0 0.0
        %2307 = vmatprep.subr.mxu0 0.0
        %2308 = vmatpush1.msra.mxu0 0.0
        %2309 = vmatprep.subr.mxu0 0.0
        %2310 = vmatpush1.msra.mxu0 0.0
        %2311 = vmatprep.subr.mxu0 0.0
        %2312 = vmatpush1.msra.mxu0 0.0
        %2313 = vmatprep.subr.mxu0 0.0
        %2314 = vmatpush1.msra.mxu0 0.0
        %2315 = vmatprep.subr.mxu0 0.0
        %2316 = vmatpush1.msra.mxu0 0.0
        %2317 = vmatprep.subr.mxu0 0.0
        %2318 = vmatpush1.msra.mxu0 0.0
        %2319 = vmatprep.subr.mxu0 0.0
        %2320 = vmatpush1.msra.mxu0 0.0
        %2321 = vmatprep.subr.mxu0 0.0
        %2322 = vmatpush1.msra.mxu0 0.0
        %2323 = vmatprep.subr.mxu0 0.0
        %2324 = vmatpush1.msra.mxu0 0.0
        %2325 = vmatprep.subr.mxu0 0.0
        %2326 = vmatpush1.msra.mxu0 0.0
        %2327 = vmatprep.subr.mxu0 0.0
        %2328 = vmatpush1.msra.mxu0 0.0
        %2329 = vmatprep.subr.mxu0 0.0
        %2330 = vmatpush1.msra.mxu0 0.0
        %2331 = vmatprep.subr.mxu0 0.0
        %2332 = vmatpush1.msra.mxu0 0.0
        %2333 = vmatprep.subr.mxu0 0.0
        %2334 = vmatpush1.msra.mxu0 0.0
        %2335 = vmatprep.subr.mxu0 0.0
        %2336 = vmatpush1.msra.mxu0 0.0
        %2337 = vmatprep.subr.mxu0 0.0
        %2338 = vmatpush1.msra.mxu0 0.0
        %2339 = vmatprep.subr.mxu0 0.0
        %2340 = vmatpush1.msra.mxu0 0.0
        %2341 = vmatprep.subr.mxu0 0.0
        %2342 = vmatpush1.msra.mxu0 0.0
        %2343 = vmatprep.subr.mxu0 0.0
        %2344 = vmatpush1.msra.mxu0 0.0
        %2345 = vmatprep.subr.mxu0 0.0
        %2346 = vmatpush1.msra.mxu0 0.0
        %2347 = vmatprep.subr.mxu0 0.0
        %2348 = vmatpush1.msra.mxu0 0.0
        %2349 = vmatprep.subr.mxu0 0.0
        %2350 = vmatpush1.msra.mxu0 0.0
        %2351 = vmatprep.mubr.f32.mxu0 0.0
        %2352 = vmatmul.mubr.f32.gmra.mrb[0].mxu0 %v975
        %v2353 = vpop.f32.mrb[0].mxu0
        %v2354 = vadd.f32 %v1722, %v2353
        %v2355 = vpop.f32.mrb[0].mxu0
        %2356 = vmatprep.mubr.f32.mxu0 0.0
        %2357 = vmatmul.mubr.f32.gmra.mrb[0].mxu0 %v978
        %v2358 = vpop.f32.mrb[0].mxu0
        %v2359 = vadd.f32 %v1727, %v2358
        %v2360 = vpop.f32.mrb[0].mxu0
        %2361 = vdwg.mxu0
        %2362 = vmatprep.subr.mxu0 0.0
        %2363 = vmatpush1.msra.mxu0 %v680
        %2364 = vmatprep.subr.mxu0 0.0
        %2365 = vmatpush1.msra.mxu0 %v685
        %2366 = vmatprep.subr.mxu0 0.0
        %2367 = vmatpush1.msra.mxu0 0.0
        %2368 = vmatprep.subr.mxu0 0.0
        %2369 = vmatpush1.msra.mxu0 0.0
        %2370 = vmatprep.subr.mxu0 0.0
        %2371 = vmatpush1.msra.mxu0 0.0
        %2372 = vmatprep.subr.mxu0 0.0
        %2373 = vmatpush1.msra.mxu0 0.0
        %2374 = vmatprep.subr.mxu0 0.0
        %2375 = vmatpush1.msra.mxu0 0.0
        %2376 = vmatprep.subr.mxu0 0.0
        %2377 = vmatpush1.msra.mxu0 0.0
        %2378 = vmatprep.subr.mxu0 0.0
        %2379 = vmatpush1.msra.mxu0 0.0
        %2380 = vmatprep.subr.mxu0 0.0
        %2381 = vmatpush1.msra.mxu0 0.0
        %2382 = vmatprep.subr.mxu0 0.0
        %2383 = vmatpush1.msra.mxu0 0.0
        %2384 = vmatprep.subr.mxu0 0.0
        %2385 = vmatpush1.msra.mxu0 0.0
        %2386 = vmatprep.subr.mxu0 0.0
        %2387 = vmatpush1.msra.mxu0 0.0
        %2388 = vmatprep.subr.mxu0 0.0
        %2389 = vmatpush1.msra.mxu0 0.0
        %2390 = vmatprep.subr.mxu0 0.0
        %2391 = vmatpush1.msra.mxu0 0.0
        %2392 = vmatprep.subr.mxu0 0.0
        %2393 = vmatpush1.msra.mxu0 0.0
        %2394 = vmatprep.subr.mxu0 0.0
        %2395 = vmatpush1.msra.mxu0 0.0
        %2396 = vmatprep.subr.mxu0 0.0
        %2397 = vmatpush1.msra.mxu0 0.0
        %2398 = vmatprep.subr.mxu0 0.0
        %2399 = vmatpush1.msra.mxu0 0.0
        %2400 = vmatprep.subr.mxu0 0.0
        %2401 = vmatpush1.msra.mxu0 0.0
        %2402 = vmatprep.subr.mxu0 0.0
        %2403 = vmatpush1.msra.mxu0 0.0
        %2404 = vmatprep.subr.mxu0 0.0
        %2405 = vmatpush1.msra.mxu0 0.0
        %2406 = vmatprep.subr.mxu0 0.0
        %2407 = vmatpush1.msra.mxu0 0.0
        %2408 = vmatprep.subr.mxu0 0.0
        %2409 = vmatpush1.msra.mxu0 0.0
        %2410 = vmatprep.subr.mxu0 0.0
        %2411 = vmatpush1.msra.mxu0 0.0
        %2412 = vmatprep.subr.mxu0 0.0
        %2413 = vmatpush1.msra.mxu0 0.0
        %2414 = vmatprep.subr.mxu0 0.0
        %2415 = vmatpush1.msra.mxu0 0.0
        %2416 = vmatprep.subr.mxu0 0.0
        %2417 = vmatpush1.msra.mxu0 0.0
        %2418 = vmatprep.subr.mxu0 0.0
        %2419 = vmatpush1.msra.mxu0 0.0
        %2420 = vmatprep.subr.mxu0 0.0
        %2421 = vmatpush1.msra.mxu0 0.0
        %2422 = vmatprep.subr.mxu0 0.0
        %2423 = vmatpush1.msra.mxu0 0.0
        %2424 = vmatprep.subr.mxu0 0.0
        %2425 = vmatpush1.msra.mxu0 0.0
        %2426 = vmatprep.mubr.f32.mxu0 0.0
        %2427 = vmatmul.mubr.f32.gmra.mrb[0].mxu0 %v975
        %v2428 = vpop.f32.mrb[0].mxu0
        %v2429 = vadd.f32 %v1797, %v2428
        %v2430 = vpop.f32.mrb[0].mxu0
        %2431 = vmatprep.mubr.f32.mxu0 0.0
        %2432 = vmatmul.mubr.f32.gmra.mrb[0].mxu0 %v978
        %v2433 = vpop.f32.mrb[0].mxu0
        %v2434 = vadd.f32 %v1802, %v2433
        %v2435 = vpop.f32.mrb[0].mxu0
        %2436 = vdwg.mxu0
        %2437 = vmatprep.subr.mxu0 0.0
        %2438 = vmatpush1.msra.mxu0 %v690
        %2439 = vmatprep.subr.mxu0 0.0
        %2440 = vmatpush1.msra.mxu0 %v695
        %2441 = vmatprep.subr.mxu0 0.0
        %2442 = vmatpush1.msra.mxu0 0.0
        %2443 = vmatprep.subr.mxu0 0.0
        %2444 = vmatpush1.msra.mxu0 0.0
        %2445 = vmatprep.subr.mxu0 0.0
        %2446 = vmatpush1.msra.mxu0 0.0
        %2447 = vmatprep.subr.mxu0 0.0
        %2448 = vmatpush1.msra.mxu0 0.0
        %2449 = vmatprep.subr.mxu0 0.0
        %2450 = vmatpush1.msra.mxu0 0.0
        %2451 = vmatprep.subr.mxu0 0.0
        %2452 = vmatpush1.msra.mxu0 0.0
        %2453 = vmatprep.subr.mxu0 0.0
        %2454 = vmatpush1.msra.mxu0 0.0
        %2455 = vmatprep.subr.mxu0 0.0
        %2456 = vmatpush1.msra.mxu0 0.0
        %2457 = vmatprep.subr.mxu0 0.0
        %2458 = vmatpush1.msra.mxu0 0.0
        %2459 = vmatprep.subr.mxu0 0.0
        %2460 = vmatpush1.msra.mxu0 0.0
        %2461 = vmatprep.subr.mxu0 0.0
        %2462 = vmatpush1.msra.mxu0 0.0
        %2463 = vmatprep.subr.mxu0 0.0
        %2464 = vmatpush1.msra.mxu0 0.0
        %2465 = vmatprep.subr.mxu0 0.0
        %2466 = vmatpush1.msra.mxu0 0.0
        %2467 = vmatprep.subr.mxu0 0.0
        %2468 = vmatpush1.msra.mxu0 0.0
        %2469 = vmatprep.subr.mxu0 0.0
        %2470 = vmatpush1.msra.mxu0 0.0
        %2471 = vmatprep.subr.mxu0 0.0
        %2472 = vmatpush1.msra.mxu0 0.0
        %2473 = vmatprep.subr.mxu0 0.0
        %2474 = vmatpush1.msra.mxu0 0.0
        %2475 = vmatprep.subr.mxu0 0.0
        %2476 = vmatpush1.msra.mxu0 0.0
        %2477 = vmatprep.subr.mxu0 0.0
        %2478 = vmatpush1.msra.mxu0 0.0
        %2479 = vmatprep.subr.mxu0 0.0
        %2480 = vmatpush1.msra.mxu0 0.0
        %2481 = vmatprep.subr.mxu0 0.0
        %2482 = vmatpush1.msra.mxu0 0.0
        %2483 = vmatprep.subr.mxu0 0.0
        %2484 = vmatpush1.msra.mxu0 0.0
        %2485 = vmatprep.subr.mxu0 0.0
        %2486 = vmatpush1.msra.mxu0 0.0
        %2487 = vmatprep.subr.mxu0 0.0
        %2488 = vmatpush1.msra.mxu0 0.0
        %2489 = vmatprep.subr.mxu0 0.0
        %2490 = vmatpush1.msra.mxu0 0.0
        %2491 = vmatprep.subr.mxu0 0.0
        %2492 = vmatpush1.msra.mxu0 0.0
        %2493 = vmatprep.subr.mxu0 0.0
        %2494 = vmatpush1.msra.mxu0 0.0
        %2495 = vmatprep.subr.mxu0 0.0
        %2496 = vmatpush1.msra.mxu0 0.0
        %2497 = vmatprep.subr.mxu0 0.0
        %2498 = vmatpush1.msra.mxu0 0.0
        %2499 = vmatprep.subr.mxu0 0.0
        %2500 = vmatpush1.msra.mxu0 0.0
        %2501 = vmatprep.mubr.f32.mxu0 0.0
        %2502 = vmatmul.mubr.f32.gmra.mrb[0].mxu0 %v975
        %v2503 = vpop.f32.mrb[0].mxu0
        %v2504 = vadd.f32 %v1872, %v2503
        %v2505 = vpop.f32.mrb[0].mxu0
        %2506 = vmatprep.mubr.f32.mxu0 0.0
        %2507 = vmatmul.mubr.f32.gmra.mrb[0].mxu0 %v978
        %v2508 = vpop.f32.mrb[0].mxu0
        %v2509 = vadd.f32 %v1877, %v2508
        %v2510 = vpop.f32.mrb[0].mxu0
        %2511 = vdwg.mxu0
        %v2512 = vsub.f32 %v2279, %v2204
        %v2513 = vsub.f32 %v2284, %v2205
        %v2514 = vsub.f32 %v2354, %v2206
        %v2515 = vsub.f32 %v2359, %v2207
        %v2516 = vsub.f32 %v2429, %v2208
        %v2517 = vsub.f32 %v2434, %v2209
        %v2518 = vsub.f32 %v2504, %v2210
        %v2519 = vsub.f32 %v2509, %v2211
        %v2520 = vsub.f32 %v1947, %v2180
        %v2521 = vsub.f32 %v1952, %v2181
        %v2522 = vsub.f32 %v2022, %v2182
        %v2523 = vsub.f32 %v2027, %v2183
        %v2524 = vsub.f32 %v2097, %v2184
        %v2525 = vsub.f32 %v2102, %v2185
        %v2526 = vsub.f32 %v2172, %v2186
        %v2527 = vsub.f32 %v2177, %v2187
        %v2528 = vmul.f32 %v2180, 2.0
        %v2529 = vmul.f32 %v2181, 2.0
        %v2530 = vmul.f32 %v2182, 2.0
        %v2531 = vmul.f32 %v2183, 2.0
        %v2532 = vmul.f32 %v2184, 2.0
        %v2533 = vmul.f32 %v2185, 2.0
        %v2534 = vmul.f32 %v2186, 2.0
        %v2535 = vmul.f32 %v2187, 2.0
        %v2536 = vadd.f32 %v2528, 0.0001
        %v2537 = vadd.f32 %v2529, 0.0001
        %v2538 = vadd.f32 %v2530, 0.0001
        %v2539 = vadd.f32 %v2531, 0.0001
        %v2540 = vadd.f32 %v2532, 0.0001
        %v2541 = vadd.f32 %v2533, 0.0001
        %v2542 = vadd.f32 %v2534, 0.0001
        %v2543 = vadd.f32 %v2535, 0.0001
        %v2544 = vmul.f32 %v2520, 2.0
        %v2545 = vmul.f32 %v2521, 2.0
        %v2546 = vmul.f32 %v2522, 2.0
        %v2547 = vmul.f32 %v2523, 2.0
        %v2548 = vmul.f32 %v2524, 2.0
        %v2549 = vmul.f32 %v2525, 2.0
        %v2550 = vmul.f32 %v2526, 2.0
        %v2551 = vmul.f32 %v2527, 2.0
        %v2552 = vadd.f32 %v2544, 0.0009
        %v2553 = vadd.f32 %v2545, 0.0009
        %v2554 = vadd.f32 %v2546, 0.0009
        %v2555 = vadd.f32 %v2547, 0.0009
        %v2556 = vadd.f32 %v2548, 0.0009
        %v2557 = vadd.f32 %v2549, 0.0009
        %v2558 = vadd.f32 %v2550, 0.0009
        %v2559 = vadd.f32 %v2551, 0.0009
        %v2560 = vmul.f32 %v2536, %v2552
        %v2561 = vmul.f32 %v2537, %v2553
        %v2562 = vmul.f32 %v2538, %v2554
        %v2563 = vmul.f32 %v2539, %v2555
        %v2564 = vmul.f32 %v2540, %v2556
        %v2565 = vmul.f32 %v2541, %v2557
        %v2566 = vmul.f32 %v2542, %v2558
        %v2567 = vmul.f32 %v2543, %v2559
        %v2568 = vadd.f32 %v2204, 0.0001
        %v2569 = vadd.f32 %v2205, 0.0001
        %v2570 = vadd.f32 %v2206, 0.0001
        %v2571 = vadd.f32 %v2207, 0.0001
        %v2572 = vadd.f32 %v2208, 0.0001
        %v2573 = vadd.f32 %v2209, 0.0001
        %v2574 = vadd.f32 %v2210, 0.0001
        %v2575 = vadd.f32 %v2211, 0.0001
        %v2576 = vadd.f32 %v2512, 0.0009
        %v2577 = vadd.f32 %v2513, 0.0009
        %v2578 = vadd.f32 %v2514, 0.0009
        %v2579 = vadd.f32 %v2515, 0.0009
        %v2580 = vadd.f32 %v2516, 0.0009
        %v2581 = vadd.f32 %v2517, 0.0009
        %v2582 = vadd.f32 %v2518, 0.0009
        %v2583 = vadd.f32 %v2519, 0.0009
        %v2584 = vmul.f32 %v2568, %v2576
        %v2585 = vmul.f32 %v2569, %v2577
        %v2586 = vmul.f32 %v2570, %v2578
        %v2587 = vmul.f32 %v2571, %v2579
        %v2588 = vmul.f32 %v2572, %v2580
        %v2589 = vmul.f32 %v2573, %v2581
        %v2590 = vmul.f32 %v2574, %v2582
        %v2591 = vmul.f32 %v2575, %v2583
        %v2592 = vrcp.pop %v2584
        %v2593 = vrcp.pop %v2585
        %v2594 = vrcp.pop %v2586
        %v2595 = vrcp.pop %v2587
        %v2596 = vrcp.pop %v2588
        %v2597 = vrcp.pop %v2589
        %v2598 = vrcp.pop %v2590
        %v2599 = vrcp.pop %v2591
        %v2600 = vmul.f32 %v2560, %v2592
        %v2601 = vmul.f32 %v2561, %v2593
        %v2602 = vmul.f32 %v2562, %v2594
        %v2603 = vmul.f32 %v2563, %v2595
        %v2604 = vmul.f32 %v2564, %v2596
        %v2605 = vmul.f32 %v2565, %v2597
        %v2606 = vmul.f32 %v2566, %v2598
        %v2607 = vmul.f32 %v2567, %v2599
        %v2608 = vsel %vm302, %v2600, 0.0
        %v2609 = vsel %vm302, %v2601, 0.0
        %v2610 = vadd.f32 %v2608, %v2609
        %v2611 = vsel %vm302, %v2602, 0.0
        %v2612 = vadd.f32 %v2610, %v2611
        %v2613 = vsel %vm302, %v2603, 0.0
        %v2614 = vadd.f32 %v2612, %v2613
        %v2615 = vsel %vm302, %v2604, 0.0
        %v2616 = vadd.f32 %v2614, %v2615
        %v2617 = vsel %vm302, %v2605, 0.0
        %v2618 = vadd.f32 %v2616, %v2617
        %v2619 = vsel %vm302, %v2606, 0.0
        %v2620 = vadd.f32 %v2618, %v2619
        %v2621 = vsel %vm302, %v2607, 0.0
        %v2622 = vadd.f32 %v2620, %v2621
        %2623 = vadd.xlane.f32.xlu0 %v2622
        %v2624 = vpop.xlane.xlu0 %2623
        %v2625 = vrot.slane %v2624, 4
        %v2626 = vadd.f32 %v2624, %v2625
        %v2627 = vrot.slane %v2626, 2
        %v2628 = vadd.f32 %v2626, %v2627
        %v2629 = vrot.slane %v2628, 1
        %v2630 = vadd.f32 %v2628, %v2629
        %s2631 = vtos %v2630
        %v2632 = vstv %s2631
        %2633 = vst [vmem:[%s281] sm:$0xff] %v2632
        %s2634 = sand.u32 %s122, 1
        %s2635 = scalar_lea.sflag [#allocation4], %s2634
        %s2636 = sand.u32 %s122, 1
        %s2637 = smul.addr %s2636, 8
        %s2638 = scalar_lea.vmem [#allocation9], %s2637
        // Predicated region
        $region53: #{tpu_custom_call.1} parent=35 // pred_check
          %p2639 = pneg %p132
        $region54: #{tpu_custom_call.1} parent=35 // pred_check_branch
          %2641 = sbr.rel (%p2639) target = $region56
        $region55: #{tpu_custom_call.1} parent=35 // pred_region
          %s2643 = ssub.s32 128, 128
          %2644 = vsyncadd %s2635, %s2643
          %s2645 = smul.addr %s20, 128
          %s2646 = scalar_lea.hbm %s4, %s2645
          %s2648 = sshll.u32 %s2638, 4
          %s2649 = int_to_ptr.vmem [resolvable:$true] %s2648
          %2651 = dma.vmem_to_hbm [thread:$0]  %s2649, 128, %s2646, %s2635
        $region56: #{tpu_custom_call.1} parent=35 // pred_fallthru
          _
      $region36: #{tpu_custom_call.1} parent=5 // pred_fallthru
        _
      %p2652 = scmp.le.s32.totalorder 2, %s15
      // Predicated region
      $region57: #{tpu_custom_call.1} parent=5 // pred_check
        %p2653 = pneg %p2652
      $region58: #{tpu_custom_call.1} parent=5 // pred_check_branch
        %2655 = sbr.rel (%p2653) target = $region60
      $region59: #{tpu_custom_call.1} parent=5 // pred_region
        %s2656 = ssub.s32 %s15, 2
        // Predicated region
        $region61: #{tpu_custom_call.1} parent=59 // pred_check
          %p2657 = pneg %p138
        $region62: #{tpu_custom_call.1} parent=59 // pred_check_branch
          %2659 = sbr.rel (%p2657) target = $region64
        $region63: #{tpu_custom_call.1} parent=59 // pred_region
          %s2660 = sand.u32 %s123, 1
          %s2661 = scalar_lea.sflag [#allocation4], %s2660
          %s2662 = sand.u32 %s123, 1
          %s2663 = smul.addr %s2662, 8
          %s2664 = scalar_lea.vmem [#allocation9], %s2663
          %2665 = dma.done %s2661, 128
        $region64: #{tpu_custom_call.1} parent=59 // pred_fallthru
          _
      $region60: #{tpu_custom_call.1} parent=5 // pred_fallthru
        _
    $region6: #{tpu_custom_call.1} parent=1 // loop_footer
      %s19 = sadd.s32 1, %s15
    $region7: #{tpu_custom_call.1} parent=1 // loop_footer_branch
      %14 = sbr.rel target = $region3
    $region8: #{tpu_custom_call.1} parent=1 // loop_exit
      _
    %2666 = vsyncpa [#allocation3], 1
    %s2667 = scalar_lea.sflag [#allocation3], 1
    %2668 = vsyncpa %s2667, 1
    %2669 = vsyncpa [#allocation6], 1
    %2670 = vsyncpa [#allocation4], 1
    %s2671 = scalar_lea.sflag [#allocation4], 1
    %2672 = vsyncpa %s2671, 1

</llo_original>
